<compile_context>
chip_gen: v5e
topology: v5e:2x2
jax: 0.10.0
libtpu: 0.0.40
codegen_flags: <defaults>
</compile_context>

<pallas_src>
import functools

import jax
import jax.numpy as jnp
from jax.experimental import pallas as pl
from jax.experimental.pallas import tpu as pltpu

_SQRT_HALF = 0.7071067811865476
_MIB = 1024 * 1024


# ----------------------------------------------------------------------------
# Hardware-aware VMEM budget + optional single-buffering of constant weights.
# ----------------------------------------------------------------------------
@functools.lru_cache(maxsize=None)
def _vmem_cap_bytes():
    # v5e / v6e expose 128 MiB of physical VMEM, v7x only 64 MiB.  Leave
    # headroom for Mosaic-internal scratch; never drop below the 32 MiB default
    # scoped limit.  Fall back to a universally safe 64 MiB cap.
    try:
        cap = int(pltpu.get_tpu_info().vmem_capacity_bytes)
        return max(32 * _MIB, cap - 24 * _MIB)
    except Exception:  # noqa: BLE001 - info query unavailable on this build
        return 64 * _MIB


def _compiler_params(resident_bytes, dims):
    limit = int(min(max(int(resident_bytes) + 4 * _MIB, 32 * _MIB),
                    _vmem_cap_bytes()))
    return pltpu.CompilerParams(dimension_semantics=dims,
                                vmem_limit_bytes=limit)


@functools.lru_cache(maxsize=None)
def _weight_pipeline_kwargs():
    """Extra BlockSpec kwargs for grid-invariant (weight) operands.

    Pallas double-buffers every pipelined input even when its block index never
    changes; pipeline_mode=pl.Buffered(1) keeps a single weight copy resident.
    Probed once with a tiny kernel and disabled silently if rejected.
    """
    try:
        with jax.ensure_compile_time_eval():
            def _probe(a_ref, w_ref, o_ref):
                o_ref[...] = a_ref[...] + w_ref[...]

            fn = pl.pallas_call(
                _probe,
                out_shape=jax.ShapeDtypeStruct((16, 128), jnp.float32),
                grid=(2,),
                in_specs=[
                    pl.BlockSpec((8, 128), lambda i: (i, 0)),
                    pl.BlockSpec((8, 128), lambda i: (0, 0),
                                 pipeline_mode=pl.Buffered(1)),
                ],
                out_specs=pl.BlockSpec((8, 128), lambda i: (i, 0)),
            )
            jax.block_until_ready(fn(jnp.zeros((16, 128), jnp.float32),
                                     jnp.zeros((8, 128), jnp.float32)))
        return {"pipeline_mode": pl.Buffered(1)}
    except Exception:  # noqa: BLE001 - older/newer Pallas without Buffered(1)
        return {}


def _weight_buffers():
    return 1 if _weight_pipeline_kwargs() else 2


def _const_spec(shape):
    # Grid-invariant operand on a rank-1 grid (weights / biases / LN params).
    return pl.BlockSpec(shape, lambda i: (0, 0), **_weight_pipeline_kwargs())


def _pick_row_tile(n_rows, cap=512):
    # Largest multiple-of-8 row tile (<= cap) dividing the flattened B*T row
    # count; tiny inputs fall back to one full-extent block (always legal).
    for tm in (512, 256, 128, 64, 32, 16, 8):
        if tm <= cap and n_rows % tm == 0:
            return tm
    return n_rows


# ----------------------------------------------------------------------------
# Kernel 1: fused QKV projection, row-tiled over the flattened (B*T) axis.
# ----------------------------------------------------------------------------
def qkv_kernel(x_ref, wqkv_ref, qkv_ref):
    xb = x_ref[...].astype(jnp.bfloat16)                       # (TM, E)
    qkv = jnp.dot(xb, wqkv_ref[...], preferred_element_type=jnp.float32)
    qkv_ref[...] = qkv.astype(qkv_ref.dtype)


def qkv_project(x2d, wqkv):
    N, E = x2d.shape
    E3 = wqkv.shape[1]
    tm = _pick_row_tile(N)
    wb = _weight_buffers()
    resident = (2 * tm * E * 4          # x row blocks (double buffered)
                + wb * E * E3 * 2       # fused weight (bf16)
                + 2 * tm * E3 * 2       # bf16 output blocks (double buffered)
                + tm * E3 * 4)          # f32 matmul result before cast
    return pl.pallas_call(
        qkv_kernel,
        out_shape=jax.ShapeDtypeStruct((N, E3), jnp.bfloat16),
        grid=(N // tm,),
        in_specs=[
            pl.BlockSpec((tm, E), lambda i: (i, 0)),            # activations
            _const_spec((E, E3)),                               # fused qkv weight
        ],
        out_specs=pl.BlockSpec((tm, E3), lambda i: (i, 0)),
        compiler_params=_compiler_params(resident, ("parallel",)),
        cost_estimate=pl.CostEstimate(
            flops=2 * N * E * E3,
            transcendentals=0,
            bytes_accessed=int(N * E * 4 + E * E3 * 2 + N * E3 * 2)),
    )(x2d, wqkv)


# ----------------------------------------------------------------------------
# Kernel 2: attention core.  Head-major fused qkv columns are sliced directly
# via index_maps; the output is written straight into (B, T, E).
# ----------------------------------------------------------------------------
def _softmax_attend(q, k, v, scale):
    # energy = (q k^T) * sqrt(head_dim): the reference module MULTIPLIES by
    # sqrt(d) (self.dk = (E//H)**0.5); preserved here.
    energy = jax.lax.dot_general(
        q, k, dimension_numbers=(((1,), (1,)), ((), ())),
        preferred_element_type=jnp.float32) * scale
    energy = energy - jnp.max(energy, axis=-1, keepdims=True)
    p = jnp.exp(energy)
    p = p * pl.reciprocal(jnp.sum(p, axis=-1, keepdims=True), approx=True)
    return jnp.dot(p.astype(jnp.bfloat16), v, preferred_element_type=jnp.float32)


def attn_group_kernel(q_ref, k_ref, v_ref, o_ref, *, scale, head_dim, heads):
    # One (batch, head-group) pair per grid step; the q/k/v/out blocks are
    # lane-dense column windows (heads * head_dim is a multiple of 128).
    for h in range(heads):
        sl = slice(h * head_dim, (h + 1) * head_dim)
        out_h = _softmax_attend(q_ref[0, :, sl], k_ref[0, :, sl],
                                v_ref[0, :, sl], scale)
        o_ref[0, :, sl] = out_h.astype(o_ref.dtype)


def attn_all_heads_kernel(qkv_ref, o_ref, *, scale, head_dim, head_num,
                          embed_dim):
    # Fallback for small embeddings (E < 128): one batch element per grid step,
    # all heads sliced in-VMEM from the full-width fused qkv block.
    for h in range(head_num):
        lo = h * head_dim
        q = qkv_ref[0, :, lo:lo + head_dim]
        k = qkv_ref[0, :, embed_dim + lo:embed_dim + lo + head_dim]
        v = qkv_ref[0, :, 2 * embed_dim + lo:2 * embed_dim + lo + head_dim]
        o_ref[0, :, lo:lo + head_dim] = (
            _softmax_attend(q, k, v, scale).astype(o_ref.dtype))


def _heads_per_group(head_num, head_dim):
    # Smallest head group whose combined lane width is a 128-multiple.
    for g in range(1, head_num + 1):
        if head_num % g == 0 and (g * head_dim) % 128 == 0:
            return g
    return head_num


def attn_core(qkv, head_num, scale):
    # qkv: (B, T, 3E) bf16 with head-major columns (k*E + h*d + d_idx); output
    # written directly as (B, T, E) with column h*d + d_idx, so no wrapper-side
    # (B,T,H,d)<->(B,H,T,d) transposes ever touch HBM.
    B, T, E3 = qkv.shape
    E = E3 // 3
    d = E // head_num
    hsub = _heads_per_group(head_num, d)
    W = hsub * d
    # TODO(synk): flash-style K/V tiling (online softmax) once T grows past ~1k
    # so the full (T, T) probability block stops fitting v7x's 64 MiB VMEM.
    if W % 128 == 0:
        G = head_num // hsub                  # W-wide column blocks per E
        kernel = functools.partial(attn_group_kernel, scale=float(scale),
                                   head_dim=d, heads=hsub)
        grid = (B, G)
        in_specs = [
            pl.BlockSpec((1, T, W), lambda b, g: (b, 0, g)),           # q
            pl.BlockSpec((1, T, W), lambda b, g: (b, 0, G + g)),       # k
            pl.BlockSpec((1, T, W), lambda b, g: (b, 0, 2 * G + g)),   # v
        ]
        out_spec = pl.BlockSpec((1, T, W), lambda b, g: (b, 0, g))
        operands = (qkv, qkv, qkv)
        dims = ("parallel", "parallel")
        resident = (3 * 2 * T * W * 2 + 2 * T * W * 2   # q/k/v/out (2 buffers)
                    + 8 * T * T + 4 * T * W)            # f32 energy/p + result
    else:
        kernel = functools.partial(attn_all_heads_kernel, scale=float(scale),
                                   head_dim=d, head_num=head_num, embed_dim=E)
        grid = (B,)
        in_specs = [pl.BlockSpec((1, T, E3), lambda b: (b, 0, 0))]
        out_spec = pl.BlockSpec((1, T, E), lambda b: (b, 0, 0))
        operands = (qkv,)
        dims = ("parallel",)
        resident = (2 * T * E3 * 2 + 2 * T * E * 2
                    + 8 * T * T + 4 * T * E)
    return pl.pallas_call(
        kernel,
        out_shape=jax.ShapeDtypeStruct((B, T, E), jnp.bfloat16),
        grid=grid,
        in_specs=in_specs,
        out_specs=out_spec,
        compiler_params=_compiler_params(resident, dims),
        cost_estimate=pl.CostEstimate(
            flops=4 * B * head_num * T * T * d,
            transcendentals=B * head_num * T * (T + 1),
            bytes_accessed=int(B * T * (E3 + E) * 2)),
    )(*operands)


# ----------------------------------------------------------------------------
# Kernel 3: out-projection + residual + LN1 + MLP + residual + LN2, row-tiled.
# ----------------------------------------------------------------------------
def post_block_kernel(x_ref, attn_ref, wo_ref, g1_ref, b1_ref,
                      w1_ref, bias1_ref, w2_ref, bias2_ref,
                      g2_ref, b2_ref, o_ref):
    x = x_ref[...].astype(jnp.float32)                          # (TM, E)

    # out-projection: single full-K matmul, bf16 in / f32 accumulate.
    attn_out = jnp.dot(attn_ref[...], wo_ref[...],
                       preferred_element_type=jnp.float32)

    # residual + LayerNorm1 (torch: biased variance, eps=1e-5); dropout = id.
    x1 = x + attn_out
    mu1 = jnp.mean(x1, axis=-1, keepdims=True)
    var1 = jnp.mean((x1 - mu1) ** 2, axis=-1, keepdims=True)
    x1 = (x1 - mu1) * jax.lax.rsqrt(var1 + 1e-5) * g1_ref[...] + b1_ref[...]

    # MLP: Linear -> GELU (exact erf, torch nn.GELU default) -> Linear.
    h1 = jnp.dot(x1.astype(jnp.bfloat16), w1_ref[...],
                 preferred_element_type=jnp.float32) + bias1_ref[...]
    h1 = 0.5 * h1 * (1.0 + jax.lax.erf(h1 * _SQRT_HALF))
    h2 = jnp.dot(h1.astype(jnp.bfloat16), w2_ref[...],
                 preferred_element_type=jnp.float32) + bias2_ref[...]

    # residual + LayerNorm2.
    x2 = x1 + h2
    mu2 = jnp.mean(x2, axis=-1, keepdims=True)
    var2 = jnp.mean((x2 - mu2) ** 2, axis=-1, keepdims=True)
    o_ref[...] = ((x2 - mu2) * jax.lax.rsqrt(var2 + 1e-5)
                  * g2_ref[...] + b2_ref[...]).astype(o_ref.dtype)


def post_block(x2d, attn2d, p):
    N, E = x2d.shape
    M = p["w1"].shape[1]
    tm = _pick_row_tile(N)
    wb = _weight_buffers()
    weight_bytes = 2 * (E * E + 2 * E * M) + 4 * (M + 5 * E)
    resident = (wb * weight_bytes
                + 2 * tm * E * 4 + 2 * tm * E * 2 + 2 * tm * E * 4   # x/attn/out
                + 4 * tm * (3 * E + M))                              # f32 temps
    return pl.pallas_call(
        post_block_kernel,
        out_shape=jax.ShapeDtypeStruct((N, E), x2d.dtype),
        grid=(N // tm,),
        in_specs=[
            pl.BlockSpec((tm, E), lambda i: (i, 0)),     # residual input x
            pl.BlockSpec((tm, E), lambda i: (i, 0)),     # attention output (bf16)
            _const_spec((E, E)),                         # wo
            _const_spec((1, E)), _const_spec((1, E)),    # LN1 gamma / beta
            _const_spec((E, M)), _const_spec((1, M)),    # fc1 W / b
            _const_spec((M, E)), _const_spec((1, E)),    # fc2 W / b
            _const_spec((1, E)), _const_spec((1, E)),    # LN2 gamma / beta
        ],
        out_specs=pl.BlockSpec((tm, E), lambda i: (i, 0)),
        compiler_params=_compiler_params(resident, ("parallel",)),
        cost_estimate=pl.CostEstimate(
            flops=2 * N * (E * E + 2 * E * M),
            transcendentals=N * (M + 2),
            bytes_accessed=int(weight_bytes + N * E * (4 + 2 + 4))),
    )(x2d, attn2d, p["wo"], p["g1"], p["b1"], p["w1"], p["bias1"],
      p["w2"], p["bias2"], p["g2"], p["b2"])


# ----------------------------------------------------------------------------
# One encoder block = 3 pallas_calls; only free leading-dim reshapes outside.
# ----------------------------------------------------------------------------
def encoder_block(x, p, head_num):
    B, T, E = x.shape
    d = E // head_num
    x2d = x.reshape(B * T, E)                                   # free reshape
    qkv = qkv_project(x2d, p["wqkv"]).reshape(B, T, 3 * E)      # (B,T,3E) bf16
    attn = attn_core(qkv, head_num, float(d) ** 0.5)            # (B,T,E) bf16
    y2d = post_block(x2d, attn.reshape(B * T, E), p)
    return y2d.reshape(B, T, E)


def transformer_encoder(x, blocks, head_num):
    # Sequential stack of encoder blocks (matches nn.ModuleList loop).
    for p in blocks:
        x = encoder_block(x, p, head_num)
    return x


# ----------------------------------------------------------------------------
# Deterministic parameter construction (plain-JAX glue).
# ----------------------------------------------------------------------------
def init_block_params(key, embedding_dim, head_num, mlp_dim):
    E, H, M = embedding_dim, head_num, mlp_dim
    d = E // H
    ks = jax.random.split(key, 6)

    def unif(k, shape, fan_in):
        bound = 1.0 / (fan_in ** 0.5)
        return jax.random.uniform(k, shape, jnp.float32, -bound, bound)

    # qkv_layer: nn.Linear(E, 3E, bias=False) -> weight (3E, E), y = x @ W.T.
    w_qkv = unif(ks[0], (3 * E, E), E)
    # Reproduce rearrange 'b t (d k h) -> k b h t d': qkv feature index
    # f = d_idx*3*H + k_idx*H + h_idx.  Build a fused (E, 3E) matrix whose
    # output column c = k_idx*E + h_idx*d + d_idx (head-major), so the
    # attention kernel can slice q/k/v per head with index_maps directly.
    kk = jnp.arange(3)[:, None, None]
    hh = jnp.arange(H)[None, :, None]
    dd = jnp.arange(d)[None, None, :]
    perm = (dd * 3 * H + kk * H + hh).reshape(-1)               # (3E,)
    wqkv = jnp.transpose(w_qkv[perm, :]).astype(jnp.bfloat16)

    # out_attention: nn.Linear(E, E, bias=False); input column order h*d+d_idx.
    w_out = unif(ks[1], (E, E), E)
    wo = jnp.transpose(w_out).astype(jnp.bfloat16)

    # MLP linears (torch default init: U(-1/sqrt(fan_in), +1/sqrt(fan_in))).
    w1 = unif(ks[2], (M, E), E)
    b1 = unif(ks[3], (1, M), E)
    w2 = unif(ks[4], (E, M), M)
    b2 = unif(ks[5], (1, E), M)

    return {
        "wqkv": wqkv, "wo": wo,
        "g1": jnp.ones((1, E), jnp.float32), "b1": jnp.zeros((1, E), jnp.float32),
        "w1": jnp.transpose(w1).astype(jnp.bfloat16), "bias1": b1,
        "w2": jnp.transpose(w2).astype(jnp.bfloat16), "bias2": b2,
        "g2": jnp.ones((1, E), jnp.float32), "b2": jnp.zeros((1, E), jnp.float32),
    }


# ----------------------------------------------------------------------------
# Plain-JAX f32 reference (same fused weight layout) for a tolerance check.
# ----------------------------------------------------------------------------
def _layer_norm(x, gamma, beta, eps=1e-5):
    mu = jnp.mean(x, axis=-1, keepdims=True)
    var = jnp.mean((x - mu) ** 2, axis=-1, keepdims=True)
    return (x - mu) * jax.lax.rsqrt(var + eps) * gamma + beta


def reference_forward(x, blocks, head_num):
    for p in blocks:
        B, T, E = x.shape
        d = E // head_num
        qkv = x @ p["wqkv"].astype(jnp.float32)                 # (B,T,3E)
        q, k, v = jnp.split(qkv, 3, axis=-1)

        def heads(a):                                           # -> (B,H,T,d)
            return a.reshape(B, T, head_num, d).transpose(0, 2, 1, 3)

        qh, kh, vh = heads(q), heads(k), heads(v)
        energy = jnp.einsum("bhid,bhjd->bhij", qh, kh) * (d ** 0.5)
        attnp = jax.nn.softmax(energy, axis=-1)
        o = jnp.einsum("bhij,bhjd->bhid", attnp, vh)
        o = o.transpose(0, 2, 1, 3).reshape(B, T, E)
        o = o @ p["wo"].astype(jnp.float32)
        x1 = _layer_norm(x + o, p["g1"], p["b1"])
        h = x1 @ p["w1"].astype(jnp.float32) + p["bias1"]
        h = 0.5 * h * (1.0 + jax.lax.erf(h * _SQRT_HALF))
        h = h @ p["w2"].astype(jnp.float32) + p["bias2"]
        x = _layer_norm(x1 + h, p["g2"], p["b2"])
    return x


if __name__ == "__main__":
    # Small shapes consistent with the module.
    B, T = 2, 8
    EMBED, HEADS, MLP_DIM, BLOCKS = 32, 4, 64, 2

    # Probe hardware / pipeline features once, outside any trace.
    _weight_pipeline_kwargs()
    _vmem_cap_bytes()

    key = jax.random.PRNGKey(0)
    x = jax.random.normal(key, (B, T, EMBED), jnp.float32)

    pkey = jax.random.PRNGKey(1234)
    block_params = [
        init_block_params(k, EMBED, HEADS, MLP_DIM)
        for k in jax.random.split(pkey, BLOCKS)
    ]

    fwd = jax.jit(functools.partial(transformer_encoder, head_num=HEADS))
    out = jax.block_until_ready(fwd(x, block_params))
    assert out.shape == (B, T, EMBED)
    assert bool(jnp.all(jnp.isfinite(out)))

    # Loose-tolerance check against a plain-JAX f32 reference: bf16 weights /
    # activations and the approximate EUP reciprocal give ~1e-2 level drift.
    ref = reference_forward(x, block_params, HEADS)
    max_err = float(jnp.max(jnp.abs(out - ref)))
    assert max_err < 0.25, f"kernel vs reference max abs err {max_err}"
    print("KERNEL_OK")
</pallas_src>

<mosaic_0001>
module attributes {stable_mosaic.version = 11 : i64} {
  func.func @_probe(%arg0: i32, %arg1: memref<8x128xf32, #tpu.memory_space<vmem>>, %arg2: memref<8x128xf32, #tpu.memory_space<vmem>>, %arg3: memref<8x128xf32, #tpu.memory_space<vmem>>) attributes {dimension_semantics = [#tpu.dimension_semantics<arbitrary>], iteration_bounds = array<i64: 2>, scalar_prefetch = 0 : i64, scratch_operands = 0 : i64, tpu.core_type = #tpu.core_type<tc>, window_params = [{transform_indices = @transform_0, window_bounds = array<i64: 8, 128>}, {pipeline_mode = #tpu.pipeline_mode<synchronous>, transform_indices = @transform_1, window_bounds = array<i64: 8, 128>}, {transform_indices = @transform_2, window_bounds = array<i64: 8, 128>}]} {
    %c0 = arith.constant 0 : index
    %c0_0 = arith.constant 0 : index
    %0 = vector.load %arg1[%c0, %c0_0] : memref<8x128xf32, #tpu.memory_space<vmem>>, vector<8x128xf32>
    %c0_1 = arith.constant 0 : index
    %c0_2 = arith.constant 0 : index
    %1 = vector.load %arg2[%c0_1, %c0_2] : memref<8x128xf32, #tpu.memory_space<vmem>>, vector<8x128xf32>
    %2 = arith.addf %0, %1 : vector<8x128xf32>
    %c0_3 = arith.constant 0 : index
    %c0_4 = arith.constant 0 : index
    %3 = vector.load %arg3[%c0_3, %c0_4] : memref<8x128xf32, #tpu.memory_space<vmem>>, vector<8x128xf32>
    tpu.vector_store %arg3[%c0_3, %c0_4], %2 {strides = array<i32>} : memref<8x128xf32, #tpu.memory_space<vmem>>, vector<8x128xf32>,
    return
  }
  func.func @transform_0(%arg0: i32) -> (i32, i32) {
    %c0_i32 = arith.constant 0 : i32
    %c0_i32_0 = arith.constant 0 : i32
    return %arg0, %c0_i32 : i32, i32
  }
  func.func @transform_1(%arg0: i32) -> (i32, i32) {
    %c0_i32 = arith.constant 0 : i32
    %c0_i32_0 = arith.constant 0 : i32
    %c0_i32_1 = arith.constant 0 : i32
    return %c0_i32, %c0_i32_0 : i32, i32
  }
  func.func @transform_2(%arg0: i32) -> (i32, i32) {
    %c0_i32 = arith.constant 0 : i32
    %c0_i32_0 = arith.constant 0 : i32
    return %arg0, %c0_i32 : i32, i32
  }
}

module attributes {stable_mosaic.version = 11 : i64} {
  func.func @post_block_kernel(%arg0: i32, %arg1: memref<16x32xf32, #tpu.memory_space<vmem>>, %arg2: memref<16x32xbf16, #tpu.memory_space<vmem>>, %arg3: memref<32x32xbf16, #tpu.memory_space<vmem>>, %arg4: memref<1x32xf32, #tpu.memory_space<vmem>>, %arg5: memref<1x32xf32, #tpu.memory_space<vmem>>, %arg6: memref<32x64xbf16, #tpu.memory_space<vmem>>, %arg7: memref<1x64xf32, #tpu.memory_space<vmem>>, %arg8: memref<64x32xbf16, #tpu.memory_space<vmem>>, %arg9: memref<1x32xf32, #tpu.memory_space<vmem>>, %arg10: memref<1x32xf32, #tpu.memory_space<vmem>>, %arg11: memref<1x32xf32, #tpu.memory_space<vmem>>, %arg12: memref<16x32xf32, #tpu.memory_space<vmem>>) attributes {dimension_semantics = [#tpu.dimension_semantics<parallel>], iteration_bounds = array<i64: 1>, scalar_prefetch = 0 : i64, scratch_operands = 0 : i64, tpu.core_type = #tpu.core_type<tc>, window_params = [{transform_indices = @transform_0, window_bounds = array<i64: 16, 32>}, {transform_indices = @transform_1, window_bounds = array<i64: 16, 32>}, {pipeline_mode = #tpu.pipeline_mode<synchronous>, transform_indices = @transform_2, window_bounds = array<i64: 32, 32>}, {pipeline_mode = #tpu.pipeline_mode<synchronous>, transform_indices = @transform_3, window_bounds = array<i64: 1, 32>}, {pipeline_mode = #tpu.pipeline_mode<synchronous>, transform_indices = @transform_4, window_bounds = array<i64: 1, 32>}, {pipeline_mode = #tpu.pipeline_mode<synchronous>, transform_indices = @transform_5, window_bounds = array<i64: 32, 64>}, {pipeline_mode = #tpu.pipeline_mode<synchronous>, transform_indices = @transform_6, window_bounds = array<i64: 1, 64>}, {pipeline_mode = #tpu.pipeline_mode<synchronous>, transform_indices = @transform_7, window_bounds = array<i64: 64, 32>}, {pipeline_mode = #tpu.pipeline_mode<synchronous>, transform_indices = @transform_8, window_bounds = array<i64: 1, 32>}, {pipeline_mode = #tpu.pipeline_mode<synchronous>, transform_indices = @transform_9, window_bounds = array<i64: 1, 32>}, {pipeline_mode = #tpu.pipeline_mode<synchronous>, transform_indices = @transform_10, window_bounds = array<i64: 1, 32>}, {transform_indices = @transform_11, window_bounds = array<i64: 16, 32>}]} {
    %c0 = arith.constant 0 : index
    %c0_0 = arith.constant 0 : index
    %0 = vector.load %arg1[%c0, %c0_0] : memref<16x32xf32, #tpu.memory_space<vmem>>, vector<16x32xf32>
    %c0_1 = arith.constant 0 : index
    %c0_2 = arith.constant 0 : index
    %1 = vector.load %arg2[%c0_1, %c0_2] : memref<16x32xbf16, #tpu.memory_space<vmem>>, vector<16x32xbf16>
    %c0_3 = arith.constant 0 : index
    %c0_4 = arith.constant 0 : index
    %2 = vector.load %arg3[%c0_3, %c0_4] : memref<32x32xbf16, #tpu.memory_space<vmem>>, vector<32x32xbf16>
    %cst = arith.constant dense<0.000000e+00> : vector<16x32xf32>
    %3 = tpu.matmul %1, %2, %cst {dimension_numbers = #tpu.dot_dimension_numbers<[1], [0], [0], [1], [0, 0, 1, 1], [], []>} : vector<16x32xbf16>, vector<32x32xbf16>, vector<16x32xf32> -> vector<16x32xf32>
    %4 = arith.addf %0, %3 : vector<16x32xf32>
    %cst_5 = arith.constant dense<0.000000e+00> : vector<16xf32>
    %5 = vector.multi_reduction <add>, %4, %cst_5 [1] : vector<16x32xf32> to vector<16xf32>
    %6 = vector.shape_cast %5 : vector<16xf32> to vector<16x1xf32>
    %cst_6 = arith.constant 3.200000e+01 : f32
    %7 = vector.broadcast %cst_6 : f32 to vector<16x1xf32>
    %8 = arith.divf %6, %7 : vector<16x1xf32>
    %9 = vector.broadcast %8 : vector<16x1xf32> to vector<16x32xf32>
    %10 = arith.subf %4, %9 : vector<16x32xf32>
    %11 = arith.mulf %10, %10 : vector<16x32xf32>
    %cst_7 = arith.constant dense<0.000000e+00> : vector<16xf32>
    %12 = vector.multi_reduction <add>, %11, %cst_7 [1] : vector<16x32xf32> to vector<16xf32>
    %13 = vector.shape_cast %12 : vector<16xf32> to vector<16x1xf32>
    %cst_8 = arith.constant 3.200000e+01 : f32
    %14 = vector.broadcast %cst_8 : f32 to vector<16x1xf32>
    %15 = arith.divf %13, %14 : vector<16x1xf32>
    %16 = vector.broadcast %8 : vector<16x1xf32> to vector<16x32xf32>
    %17 = arith.subf %4, %16 : vector<16x32xf32>
    %cst_9 = arith.constant 9.99999974E-6 : f32
    %18 = vector.broadcast %cst_9 : f32 to vector<16x1xf32>
    %19 = arith.addf %15, %18 : vector<16x1xf32>
    %20 = math.rsqrt %19 : vector<16x1xf32>
    %21 = vector.broadcast %20 : vector<16x1xf32> to vector<16x32xf32>
    %22 = arith.mulf %17, %21 : vector<16x32xf32>
    %c0_10 = arith.constant 0 : index
    %c0_11 = arith.constant 0 : index
    %23 = vector.load %arg4[%c0_10, %c0_11] : memref<1x32xf32, #tpu.memory_space<vmem>>, vector<1x32xf32>
    %24 = vector.broadcast %23 : vector<1x32xf32> to vector<16x32xf32>
    %25 = arith.mulf %22, %24 : vector<16x32xf32>
    %c0_12 = arith.constant 0 : index
    %c0_13 = arith.constant 0 : index
    %26 = vector.load %arg5[%c0_12, %c0_13] : memref<1x32xf32, #tpu.memory_space<vmem>>, vector<1x32xf32>
    %27 = vector.broadcast %26 : vector<1x32xf32> to vector<16x32xf32>
    %28 = arith.addf %25, %27 : vector<16x32xf32>
    %29 = arith.truncf %28 : vector<16x32xf32> to vector<16x32xbf16>
    %c0_14 = arith.constant 0 : index
    %c0_15 = arith.constant 0 : index
    %30 = vector.load %arg6[%c0_14, %c0_15] : memref<32x64xbf16, #tpu.memory_space<vmem>>, vector<32x64xbf16>
    %cst_16 = arith.constant dense<0.000000e+00> : vector<16x64xf32>
    %31 = tpu.matmul %29, %30, %cst_16 {dimension_numbers = #tpu.dot_dimension_numbers<[1], [0], [0], [1], [0, 0, 1, 1], [], []>} : vector<16x32xbf16>, vector<32x64xbf16>, vector<16x64xf32> -> vector<16x64xf32>
    %c0_17 = arith.constant 0 : index
    %c0_18 = arith.constant 0 : index
    %32 = vector.load %arg7[%c0_17, %c0_18] : memref<1x64xf32, #tpu.memory_space<vmem>>, vector<1x64xf32>
    %33 = vector.broadcast %32 : vector<1x64xf32> to vector<16x64xf32>
    %34 = arith.addf %31, %33 : vector<16x64xf32>
    %cst_19 = arith.constant 5.000000e-01 : f32
    %35 = vector.broadcast %cst_19 : f32 to vector<16x64xf32>
    %36 = arith.mulf %35, %34 : vector<16x64xf32>
    %cst_20 = arith.constant 0.707106769 : f32
    %37 = vector.broadcast %cst_20 : f32 to vector<16x64xf32>
    %38 = arith.mulf %34, %37 : vector<16x64xf32>
    %39 = math.erf %38 : vector<16x64xf32>
    %cst_21 = arith.constant 1.000000e+00 : f32
    %40 = vector.broadcast %cst_21 : f32 to vector<16x64xf32>
    %41 = arith.addf %40, %39 : vector<16x64xf32>
    %42 = arith.mulf %36, %41 : vector<16x64xf32>
    %43 = arith.truncf %42 : vector<16x64xf32> to vector<16x64xbf16>
    %c0_22 = arith.constant 0 : index
    %c0_23 = arith.constant 0 : index
    %44 = vector.load %arg8[%c0_22, %c0_23] : memref<64x32xbf16, #tpu.memory_space<vmem>>, vector<64x32xbf16>
    %cst_24 = arith.constant dense<0.000000e+00> : vector<16x32xf32>
    %45 = tpu.matmul %43, %44, %cst_24 {dimension_numbers = #tpu.dot_dimension_numbers<[1], [0], [0], [1], [0, 0, 1, 1], [], []>} : vector<16x64xbf16>, vector<64x32xbf16>, vector<16x32xf32> -> vector<16x32xf32>
    %c0_25 = arith.constant 0 : index
    %c0_26 = arith.constant 0 : index
    %46 = vector.load %arg9[%c0_25, %c0_26] : memref<1x32xf32, #tpu.memory_space<vmem>>, vector<1x32xf32>
    %47 = vector.broadcast %46 : vector<1x32xf32> to vector<16x32xf32>
    %48 = arith.addf %45, %47 : vector<16x32xf32>
    %49 = arith.addf %28, %48 : vector<16x32xf32>
    %cst_27 = arith.constant dense<0.000000e+00> : vector<16xf32>
    %50 = vector.multi_reduction <add>, %49, %cst_27 [1] : vector<16x32xf32> to vector<16xf32>
    %51 = vector.shape_cast %50 : vector<16xf32> to vector<16x1xf32>
    %cst_28 = arith.constant 3.200000e+01 : f32
    %52 = vector.broadcast %cst_28 : f32 to vector<16x1xf32>
    %53 = arith.divf %51, %52 : vector<16x1xf32>
    %54 = vector.broadcast %53 : vector<16x1xf32> to vector<16x32xf32>
    %55 = arith.subf %49, %54 : vector<16x32xf32>
    %56 = arith.mulf %55, %55 : vector<16x32xf32>
    %cst_29 = arith.constant dense<0.000000e+00> : vector<16xf32>
    %57 = vector.multi_reduction <add>, %56, %cst_29 [1] : vector<16x32xf32> to vector<16xf32>
    %58 = vector.shape_cast %57 : vector<16xf32> to vector<16x1xf32>
    %cst_30 = arith.constant 3.200000e+01 : f32
    %59 = vector.broadcast %cst_30 : f32 to vector<16x1xf32>
    %60 = arith.divf %58, %59 : vector<16x1xf32>
    %61 = vector.broadcast %53 : vector<16x1xf32> to vector<16x32xf32>
    %62 = arith.subf %49, %61 : vector<16x32xf32>
    %cst_31 = arith.constant 9.99999974E-6 : f32
    %63 = vector.broadcast %cst_31 : f32 to vector<16x1xf32>
    %64 = arith.addf %60, %63 : vector<16x1xf32>
    %65 = math.rsqrt %64 : vector<16x1xf32>
    %66 = vector.broadcast %65 : vector<16x1xf32> to vector<16x32xf32>
    %67 = arith.mulf %62, %66 : vector<16x32xf32>
    %c0_32 = arith.constant 0 : index
    %c0_33 = arith.constant 0 : index
    %68 = vector.load %arg10[%c0_32, %c0_33] : memref<1x32xf32, #tpu.memory_space<vmem>>, vector<1x32xf32>
    %69 = vector.broadcast %68 : vector<1x32xf32> to vector<16x32xf32>
    %70 = arith.mulf %67, %69 : vector<16x32xf32>
    %c0_34 = arith.constant 0 : index
    %c0_35 = arith.constant 0 : index
    %71 = vector.load %arg11[%c0_34, %c0_35] : memref<1x32xf32, #tpu.memory_space<vmem>>, vector<1x32xf32>
    %72 = vector.broadcast %71 : vector<1x32xf32> to vector<16x32xf32>
    %73 = arith.addf %70, %72 : vector<16x32xf32>
    %c0_36 = arith.constant 0 : index
    %c0_37 = arith.constant 0 : index
    %74 = vector.load %arg12[%c0_36, %c0_37] : memref<16x32xf32, #tpu.memory_space<vmem>>, vector<16x32xf32>
    tpu.vector_store %arg12[%c0_36, %c0_37], %73 {strides = array<i32>} : memref<16x32xf32, #tpu.memory_space<vmem>>, vector<16x32xf32>,
    return
  }
  func.func @transform_0(%arg0: i32) -> (i32, i32) {
    %c0_i32 = arith.constant 0 : i32
    %c0_i32_0 = arith.constant 0 : i32
    return %arg0, %c0_i32 : i32, i32
  }
  func.func @transform_1(%arg0: i32) -> (i32, i32) {
    %c0_i32 = arith.constant 0 : i32
    %c0_i32_0 = arith.constant 0 : i32
    return %arg0, %c0_i32 : i32, i32
  }
  func.func @transform_2(%arg0: i32) -> (i32, i32) {
    %c0_i32 = arith.constant 0 : i32
    %c0_i32_0 = arith.constant 0 : i32
    %c0_i32_1 = arith.constant 0 : i32
    return %c0_i32, %c0_i32_0 : i32, i32
  }
  func.func @transform_3(%arg0: i32) -> (i32, i32) {
    %c0_i32 = arith.constant 0 : i32
    %c0_i32_0 = arith.constant 0 : i32
    %c0_i32_1 = arith.constant 0 : i32
    return %c0_i32, %c0_i32_0 : i32, i32
  }
  func.func @transform_4(%arg0: i32) -> (i32, i32) {
    %c0_i32 = arith.constant 0 : i32
    %c0_i32_0 = arith.constant 0 : i32
    %c0_i32_1 = arith.constant 0 : i32
    return %c0_i32, %c0_i32_0 : i32, i32
  }
  func.func @transform_5(%arg0: i32) -> (i32, i32) {
    %c0_i32 = arith.constant 0 : i32
    %c0_i32_0 = arith.constant 0 : i32
    %c0_i32_1 = arith.constant 0 : i32
    return %c0_i32, %c0_i32_0 : i32, i32
  }
  func.func @transform_6(%arg0: i32) -> (i32, i32) {
    %c0_i32 = arith.constant 0 : i32
    %c0_i32_0 = arith.constant 0 : i32
    %c0_i32_1 = arith.constant 0 : i32
    return %c0_i32, %c0_i32_0 : i32, i32
  }
  func.func @transform_7(%arg0: i32) -> (i32, i32) {
    %c0_i32 = arith.constant 0 : i32
    %c0_i32_0 = arith.constant 0 : i32
    %c0_i32_1 = arith.constant 0 : i32
    return %c0_i32, %c0_i32_0 : i32, i32
  }
  func.func @transform_8(%arg0: i32) -> (i32, i32) {
    %c0_i32 = arith.constant 0 : i32
    %c0_i32_0 = arith.constant 0 : i32
    %c0_i32_1 = arith.constant 0 : i32
    return %c0_i32, %c0_i32_0 : i32, i32
  }
  func.func @transform_9(%arg0: i32) -> (i32, i32) {
    %c0_i32 = arith.constant 0 : i32
    %c0_i32_0 = arith.constant 0 : i32
    %c0_i32_1 = arith.constant 0 : i32
    return %c0_i32, %c0_i32_0 : i32, i32
  }
  func.func @transform_10(%arg0: i32) -> (i32, i32) {
    %c0_i32 = arith.constant 0 : i32
    %c0_i32_0 = arith.constant 0 : i32
    %c0_i32_1 = arith.constant 0 : i32
    return %c0_i32, %c0_i32_0 : i32, i32
  }
  func.func @transform_11(%arg0: i32) -> (i32, i32) {
    %c0_i32 = arith.constant 0 : i32
    %c0_i32_0 = arith.constant 0 : i32
    return %arg0, %c0_i32 : i32, i32
  }
}

module attributes {stable_mosaic.version = 11 : i64} {
  func.func @qkv_kernel(%arg0: i32, %arg1: memref<16x32xf32, #tpu.memory_space<vmem>>, %arg2: memref<32x96xbf16, #tpu.memory_space<vmem>>, %arg3: memref<16x96xbf16, #tpu.memory_space<vmem>>) attributes {dimension_semantics = [#tpu.dimension_semantics<parallel>], iteration_bounds = array<i64: 1>, scalar_prefetch = 0 : i64, scratch_operands = 0 : i64, tpu.core_type = #tpu.core_type<tc>, window_params = [{transform_indices = @transform_0, window_bounds = array<i64: 16, 32>}, {pipeline_mode = #tpu.pipeline_mode<synchronous>, transform_indices = @transform_1, window_bounds = array<i64: 32, 96>}, {transform_indices = @transform_2, window_bounds = array<i64: 16, 96>}]} {
    %c0 = arith.constant 0 : index
    %c0_0 = arith.constant 0 : index
    %0 = vector.load %arg1[%c0, %c0_0] : memref<16x32xf32, #tpu.memory_space<vmem>>, vector<16x32xf32>
    %1 = arith.truncf %0 : vector<16x32xf32> to vector<16x32xbf16>
    %c0_1 = arith.constant 0 : index
    %c0_2 = arith.constant 0 : index
    %2 = vector.load %arg2[%c0_1, %c0_2] : memref<32x96xbf16, #tpu.memory_space<vmem>>, vector<32x96xbf16>
    %cst = arith.constant dense<0.000000e+00> : vector<16x96xf32>
    %3 = tpu.matmul %1, %2, %cst {dimension_numbers = #tpu.dot_dimension_numbers<[1], [0], [0], [1], [0, 0, 1, 1], [], []>} : vector<16x32xbf16>, vector<32x96xbf16>, vector<16x96xf32> -> vector<16x96xf32>
    %4 = arith.truncf %3 : vector<16x96xf32> to vector<16x96xbf16>
    %c0_3 = arith.constant 0 : index
    %c0_4 = arith.constant 0 : index
    %5 = vector.load %arg3[%c0_3, %c0_4] : memref<16x96xbf16, #tpu.memory_space<vmem>>, vector<16x96xbf16>
    tpu.vector_store %arg3[%c0_3, %c0_4], %4 {strides = array<i32>} : memref<16x96xbf16, #tpu.memory_space<vmem>>, vector<16x96xbf16>,
    return
  }
  func.func @transform_0(%arg0: i32) -> (i32, i32) {
    %c0_i32 = arith.constant 0 : i32
    %c0_i32_0 = arith.constant 0 : i32
    return %arg0, %c0_i32 : i32, i32
  }
  func.func @transform_1(%arg0: i32) -> (i32, i32) {
    %c0_i32 = arith.constant 0 : i32
    %c0_i32_0 = arith.constant 0 : i32
    %c0_i32_1 = arith.constant 0 : i32
    return %c0_i32, %c0_i32_0 : i32, i32
  }
  func.func @transform_2(%arg0: i32) -> (i32, i32) {
    %c0_i32 = arith.constant 0 : i32
    %c0_i32_0 = arith.constant 0 : i32
    return %arg0, %c0_i32 : i32, i32
  }
}

module attributes {stable_mosaic.version = 11 : i64} {
  func.func @attn_all_heads_kernel(%arg0: i32, %arg1: memref<1x8x96xbf16, #tpu.memory_space<vmem>>, %arg2: memref<1x8x32xbf16, #tpu.memory_space<vmem>>) attributes {dimension_semantics = [#tpu.dimension_semantics<parallel>], iteration_bounds = array<i64: 2>, scalar_prefetch = 0 : i64, scratch_operands = 0 : i64, tpu.core_type = #tpu.core_type<tc>, window_params = [{transform_indices = @transform_0, window_bounds = array<i64: 1, 8, 96>}, {transform_indices = @transform_1, window_bounds = array<i64: 1, 8, 32>}]} {
    %c0 = arith.constant 0 : index
    %c0_0 = arith.constant 0 : index
    %c0_1 = arith.constant 0 : index
    %0 = vector.load %arg1[%c0, %c0_0, %c0_1] : memref<1x8x96xbf16, #tpu.memory_space<vmem>>, vector<1x8x8xbf16>
    %1 = vector.shape_cast %0 : vector<1x8x8xbf16> to vector<8x8xbf16>
    %c0_2 = arith.constant 0 : index
    %c0_3 = arith.constant 0 : index
    %c32 = arith.constant 32 : index
    %2 = vector.load %arg1[%c0_2, %c0_3, %c32] : memref<1x8x96xbf16, #tpu.memory_space<vmem>>, vector<1x8x8xbf16>
    %3 = vector.shape_cast %2 : vector<1x8x8xbf16> to vector<8x8xbf16>
    %c0_4 = arith.constant 0 : index
    %c0_5 = arith.constant 0 : index
    %c64 = arith.constant 64 : index
    %4 = vector.load %arg1[%c0_4, %c0_5, %c64] : memref<1x8x96xbf16, #tpu.memory_space<vmem>>, vector<1x8x8xbf16>
    %5 = vector.shape_cast %4 : vector<1x8x8xbf16> to vector<8x8xbf16>
    %cst = arith.constant dense<0.000000e+00> : vector<8x8xf32>
    %6 = tpu.matmul %1, %3, %cst {dimension_numbers = #tpu.dot_dimension_numbers<[1], [1], [0], [0], [0, 0, 1, 0], [], []>} : vector<8x8xbf16>, vector<8x8xbf16>, vector<8x8xf32> -> vector<8x8xf32>
    %cst_6 = arith.constant 2.82842708 : f32
    %7 = vector.broadcast %cst_6 : f32 to vector<8x8xf32>
    %8 = arith.mulf %6, %7 : vector<8x8xf32>
    %cst_7 = arith.constant dense<0xFF800000> : vector<8xf32>
    %9 = vector.multi_reduction <maximumf>, %8, %cst_7 [1] : vector<8x8xf32> to vector<8xf32>
    %10 = vector.shape_cast %9 : vector<8xf32> to vector<8x1xf32>
    %11 = vector.broadcast %10 : vector<8x1xf32> to vector<8x8xf32>
    %12 = arith.subf %8, %11 : vector<8x8xf32>
    %13 = math.exp %12 : vector<8x8xf32>
    %cst_8 = arith.constant dense<0.000000e+00> : vector<8xf32>
    %14 = vector.multi_reduction <add>, %13, %cst_8 [1] : vector<8x8xf32> to vector<8xf32>
    %15 = vector.shape_cast %14 : vector<8xf32> to vector<8x1xf32>
    %16 = tpu.reciprocal %15 {approx = true} : vector<8x1xf32> -> vector<8x1xf32>
    %17 = vector.broadcast %16 : vector<8x1xf32> to vector<8x8xf32>
    %18 = arith.mulf %13, %17 : vector<8x8xf32>
    %19 = arith.truncf %18 : vector<8x8xf32> to vector<8x8xbf16>
    %cst_9 = arith.constant dense<0.000000e+00> : vector<8x8xf32>
    %20 = tpu.matmul %19, %5, %cst_9 {dimension_numbers = #tpu.dot_dimension_numbers<[1], [0], [0], [1], [0, 0, 1, 1], [], []>} : vector<8x8xbf16>, vector<8x8xbf16>, vector<8x8xf32> -> vector<8x8xf32>
    %21 = arith.truncf %20 : vector<8x8xf32> to vector<8x8xbf16>
    %c0_10 = arith.constant 0 : index
    %c0_11 = arith.constant 0 : index
    %c0_12 = arith.constant 0 : index
    %22 = vector.load %arg2[%c0_10, %c0_11, %c0_12] : memref<1x8x32xbf16, #tpu.memory_space<vmem>>, vector<1x8x8xbf16>
    %23 = vector.shape_cast %22 : vector<1x8x8xbf16> to vector<8x8xbf16>
    %24 = vector.shape_cast %21 : vector<8x8xbf16> to vector<1x8x8xbf16>
    tpu.vector_store %arg2[%c0_10, %c0_11, %c0_12], %24 {strides = array<i32>} : memref<1x8x32xbf16, #tpu.memory_space<vmem>>, vector<1x8x8xbf16>,
    %c0_13 = arith.constant 0 : index
    %c0_14 = arith.constant 0 : index
    %c8 = arith.constant 8 : index
    %25 = vector.load %arg1[%c0_13, %c0_14, %c8] : memref<1x8x96xbf16, #tpu.memory_space<vmem>>, vector<1x8x8xbf16>
    %26 = vector.shape_cast %25 : vector<1x8x8xbf16> to vector<8x8xbf16>
    %c0_15 = arith.constant 0 : index
    %c0_16 = arith.constant 0 : index
    %c40 = arith.constant 40 : index
    %27 = vector.load %arg1[%c0_15, %c0_16, %c40] : memref<1x8x96xbf16, #tpu.memory_space<vmem>>, vector<1x8x8xbf16>
    %28 = vector.shape_cast %27 : vector<1x8x8xbf16> to vector<8x8xbf16>
    %c0_17 = arith.constant 0 : index
    %c0_18 = arith.constant 0 : index
    %c72 = arith.constant 72 : index
    %29 = vector.load %arg1[%c0_17, %c0_18, %c72] : memref<1x8x96xbf16, #tpu.memory_space<vmem>>, vector<1x8x8xbf16>
    %30 = vector.shape_cast %29 : vector<1x8x8xbf16> to vector<8x8xbf16>
    %cst_19 = arith.constant dense<0.000000e+00> : vector<8x8xf32>
    %31 = tpu.matmul %26, %28, %cst_19 {dimension_numbers = #tpu.dot_dimension_numbers<[1], [1], [0], [0], [0, 0, 1, 0], [], []>} : vector<8x8xbf16>, vector<8x8xbf16>, vector<8x8xf32> -> vector<8x8xf32>
    %cst_20 = arith.constant 2.82842708 : f32
    %32 = vector.broadcast %cst_20 : f32 to vector<8x8xf32>
    %33 = arith.mulf %31, %32 : vector<8x8xf32>
    %cst_21 = arith.constant dense<0xFF800000> : vector<8xf32>
    %34 = vector.multi_reduction <maximumf>, %33, %cst_21 [1] : vector<8x8xf32> to vector<8xf32>
    %35 = vector.shape_cast %34 : vector<8xf32> to vector<8x1xf32>
    %36 = vector.broadcast %35 : vector<8x1xf32> to vector<8x8xf32>
    %37 = arith.subf %33, %36 : vector<8x8xf32>
    %38 = math.exp %37 : vector<8x8xf32>
    %cst_22 = arith.constant dense<0.000000e+00> : vector<8xf32>
    %39 = vector.multi_reduction <add>, %38, %cst_22 [1] : vector<8x8xf32> to vector<8xf32>
    %40 = vector.shape_cast %39 : vector<8xf32> to vector<8x1xf32>
    %41 = tpu.reciprocal %40 {approx = true} : vector<8x1xf32> -> vector<8x1xf32>
    %42 = vector.broadcast %41 : vector<8x1xf32> to vector<8x8xf32>
    %43 = arith.mulf %38, %42 : vector<8x8xf32>
    %44 = arith.truncf %43 : vector<8x8xf32> to vector<8x8xbf16>
    %cst_23 = arith.constant dense<0.000000e+00> : vector<8x8xf32>
    %45 = tpu.matmul %44, %30, %cst_23 {dimension_numbers = #tpu.dot_dimension_numbers<[1], [0], [0], [1], [0, 0, 1, 1], [], []>} : vector<8x8xbf16>, vector<8x8xbf16>, vector<8x8xf32> -> vector<8x8xf32>
    %46 = arith.truncf %45 : vector<8x8xf32> to vector<8x8xbf16>
    %c0_24 = arith.constant 0 : index
    %c0_25 = arith.constant 0 : index
    %c8_26 = arith.constant 8 : index
    %47 = vector.load %arg2[%c0_24, %c0_25, %c8_26] : memref<1x8x32xbf16, #tpu.memory_space<vmem>>, vector<1x8x8xbf16>
    %48 = vector.shape_cast %47 : vector<1x8x8xbf16> to vector<8x8xbf16>
    %49 = vector.shape_cast %46 : vector<8x8xbf16> to vector<1x8x8xbf16>
    tpu.vector_store %arg2[%c0_24, %c0_25, %c8_26], %49 {strides = array<i32>} : memref<1x8x32xbf16, #tpu.memory_space<vmem>>, vector<1x8x8xbf16>,
    %c0_27 = arith.constant 0 : index
    %c0_28 = arith.constant 0 : index
    %c16 = arith.constant 16 : index
    %50 = vector.load %arg1[%c0_27, %c0_28, %c16] : memref<1x8x96xbf16, #tpu.memory_space<vmem>>, vector<1x8x8xbf16>
    %51 = vector.shape_cast %50 : vector<1x8x8xbf16> to vector<8x8xbf16>
    %c0_29 = arith.constant 0 : index
    %c0_30 = arith.constant 0 : index
    %c48 = arith.constant 48 : index
    %52 = vector.load %arg1[%c0_29, %c0_30, %c48] : memref<1x8x96xbf16, #tpu.memory_space<vmem>>, vector<1x8x8xbf16>
    %53 = vector.shape_cast %52 : vector<1x8x8xbf16> to vector<8x8xbf16>
    %c0_31 = arith.constant 0 : index
    %c0_32 = arith.constant 0 : index
    %c80 = arith.constant 80 : index
    %54 = vector.load %arg1[%c0_31, %c0_32, %c80] : memref<1x8x96xbf16, #tpu.memory_space<vmem>>, vector<1x8x8xbf16>
    %55 = vector.shape_cast %54 : vector<1x8x8xbf16> to vector<8x8xbf16>
    %cst_33 = arith.constant dense<0.000000e+00> : vector<8x8xf32>
    %56 = tpu.matmul %51, %53, %cst_33 {dimension_numbers = #tpu.dot_dimension_numbers<[1], [1], [0], [0], [0, 0, 1, 0], [], []>} : vector<8x8xbf16>, vector<8x8xbf16>, vector<8x8xf32> -> vector<8x8xf32>
    %cst_34 = arith.constant 2.82842708 : f32
    %57 = vector.broadcast %cst_34 : f32 to vector<8x8xf32>
    %58 = arith.mulf %56, %57 : vector<8x8xf32>
    %cst_35 = arith.constant dense<0xFF800000> : vector<8xf32>
    %59 = vector.multi_reduction <maximumf>, %58, %cst_35 [1] : vector<8x8xf32> to vector<8xf32>
    %60 = vector.shape_cast %59 : vector<8xf32> to vector<8x1xf32>
    %61 = vector.broadcast %60 : vector<8x1xf32> to vector<8x8xf32>
    %62 = arith.subf %58, %61 : vector<8x8xf32>
    %63 = math.exp %62 : vector<8x8xf32>
    %cst_36 = arith.constant dense<0.000000e+00> : vector<8xf32>
    %64 = vector.multi_reduction <add>, %63, %cst_36 [1] : vector<8x8xf32> to vector<8xf32>
    %65 = vector.shape_cast %64 : vector<8xf32> to vector<8x1xf32>
    %66 = tpu.reciprocal %65 {approx = true} : vector<8x1xf32> -> vector<8x1xf32>
    %67 = vector.broadcast %66 : vector<8x1xf32> to vector<8x8xf32>
    %68 = arith.mulf %63, %67 : vector<8x8xf32>
    %69 = arith.truncf %68 : vector<8x8xf32> to vector<8x8xbf16>
    %cst_37 = arith.constant dense<0.000000e+00> : vector<8x8xf32>
    %70 = tpu.matmul %69, %55, %cst_37 {dimension_numbers = #tpu.dot_dimension_numbers<[1], [0], [0], [1], [0, 0, 1, 1], [], []>} : vector<8x8xbf16>, vector<8x8xbf16>, vector<8x8xf32> -> vector<8x8xf32>
    %71 = arith.truncf %70 : vector<8x8xf32> to vector<8x8xbf16>
    %c0_38 = arith.constant 0 : index
    %c0_39 = arith.constant 0 : index
    %c16_40 = arith.constant 16 : index
    %72 = vector.load %arg2[%c0_38, %c0_39, %c16_40] : memref<1x8x32xbf16, #tpu.memory_space<vmem>>, vector<1x8x8xbf16>
    %73 = vector.shape_cast %72 : vector<1x8x8xbf16> to vector<8x8xbf16>
    %74 = vector.shape_cast %71 : vector<8x8xbf16> to vector<1x8x8xbf16>
    tpu.vector_store %arg2[%c0_38, %c0_39, %c16_40], %74 {strides = array<i32>} : memref<1x8x32xbf16, #tpu.memory_space<vmem>>, vector<1x8x8xbf16>,
    %c0_41 = arith.constant 0 : index
    %c0_42 = arith.constant 0 : index
    %c24 = arith.constant 24 : index
    %75 = vector.load %arg1[%c0_41, %c0_42, %c24] : memref<1x8x96xbf16, #tpu.memory_space<vmem>>, vector<1x8x8xbf16>
    %76 = vector.shape_cast %75 : vector<1x8x8xbf16> to vector<8x8xbf16>
    %c0_43 = arith.constant 0 : index
    %c0_44 = arith.constant 0 : index
    %c56 = arith.constant 56 : index
    %77 = vector.load %arg1[%c0_43, %c0_44, %c56] : memref<1x8x96xbf16, #tpu.memory_space<vmem>>, vector<1x8x8xbf16>
    %78 = vector.shape_cast %77 : vector<1x8x8xbf16> to vector<8x8xbf16>
    %c0_45 = arith.constant 0 : index
    %c0_46 = arith.constant 0 : index
    %c88 = arith.constant 88 : index
    %79 = vector.load %arg1[%c0_45, %c0_46, %c88] : memref<1x8x96xbf16, #tpu.memory_space<vmem>>, vector<1x8x8xbf16>
    %80 = vector.shape_cast %79 : vector<1x8x8xbf16> to vector<8x8xbf16>
    %cst_47 = arith.constant dense<0.000000e+00> : vector<8x8xf32>
    %81 = tpu.matmul %76, %78, %cst_47 {dimension_numbers = #tpu.dot_dimension_numbers<[1], [1], [0], [0], [0, 0, 1, 0], [], []>} : vector<8x8xbf16>, vector<8x8xbf16>, vector<8x8xf32> -> vector<8x8xf32>
    %cst_48 = arith.constant 2.82842708 : f32
    %82 = vector.broadcast %cst_48 : f32 to vector<8x8xf32>
    %83 = arith.mulf %81, %82 : vector<8x8xf32>
    %cst_49 = arith.constant dense<0xFF800000> : vector<8xf32>
    %84 = vector.multi_reduction <maximumf>, %83, %cst_49 [1] : vector<8x8xf32> to vector<8xf32>
    %85 = vector.shape_cast %84 : vector<8xf32> to vector<8x1xf32>
    %86 = vector.broadcast %85 : vector<8x1xf32> to vector<8x8xf32>
    %87 = arith.subf %83, %86 : vector<8x8xf32>
    %88 = math.exp %87 : vector<8x8xf32>
    %cst_50 = arith.constant dense<0.000000e+00> : vector<8xf32>
    %89 = vector.multi_reduction <add>, %88, %cst_50 [1] : vector<8x8xf32> to vector<8xf32>
    %90 = vector.shape_cast %89 : vector<8xf32> to vector<8x1xf32>
    %91 = tpu.reciprocal %90 {approx = true} : vector<8x1xf32> -> vector<8x1xf32>
    %92 = vector.broadcast %91 : vector<8x1xf32> to vector<8x8xf32>
    %93 = arith.mulf %88, %92 : vector<8x8xf32>
    %94 = arith.truncf %93 : vector<8x8xf32> to vector<8x8xbf16>
    %cst_51 = arith.constant dense<0.000000e+00> : vector<8x8xf32>
    %95 = tpu.matmul %94, %80, %cst_51 {dimension_numbers = #tpu.dot_dimension_numbers<[1], [0], [0], [1], [0, 0, 1, 1], [], []>} : vector<8x8xbf16>, vector<8x8xbf16>, vector<8x8xf32> -> vector<8x8xf32>
    %96 = arith.truncf %95 : vector<8x8xf32> to vector<8x8xbf16>
    %c0_52 = arith.constant 0 : index
    %c0_53 = arith.constant 0 : index
    %c24_54 = arith.constant 24 : index
    %97 = vector.load %arg2[%c0_52, %c0_53, %c24_54] : memref<1x8x32xbf16, #tpu.memory_space<vmem>>, vector<1x8x8xbf16>
    %98 = vector.shape_cast %97 : vector<1x8x8xbf16> to vector<8x8xbf16>
    %99 = vector.shape_cast %96 : vector<8x8xbf16> to vector<1x8x8xbf16>
    tpu.vector_store %arg2[%c0_52, %c0_53, %c24_54], %99 {strides = array<i32>} : memref<1x8x32xbf16, #tpu.memory_space<vmem>>, vector<1x8x8xbf16>,
    return
  }
  func.func @transform_0(%arg0: i32) -> (i32, i32, i32) {
    %c0_i32 = arith.constant 0 : i32
    %c0_i32_0 = arith.constant 0 : i32
    %c0_i32_1 = arith.constant 0 : i32
    return %arg0, %c0_i32, %c0_i32_0 : i32, i32, i32
  }
  func.func @transform_1(%arg0: i32) -> (i32, i32, i32) {
    %c0_i32 = arith.constant 0 : i32
    %c0_i32_0 = arith.constant 0 : i32
    %c0_i32_1 = arith.constant 0 : i32
    return %arg0, %c0_i32, %c0_i32_0 : i32, i32, i32
  }
}

module attributes {stable_mosaic.version = 11 : i64} {
  func.func @qkv_kernel(%arg0: i32, %arg1: memref<16x32xf32, #tpu.memory_space<vmem>>, %arg2: memref<32x96xbf16, #tpu.memory_space<vmem>>, %arg3: memref<16x96xbf16, #tpu.memory_space<vmem>>) attributes {dimension_semantics = [#tpu.dimension_semantics<parallel>], iteration_bounds = array<i64: 1>, scalar_prefetch = 0 : i64, scratch_operands = 0 : i64, tpu.core_type = #tpu.core_type<tc>, window_params = [{transform_indices = @transform_0, window_bounds = array<i64: 16, 32>}, {pipeline_mode = #tpu.pipeline_mode<synchronous>, transform_indices = @transform_1, window_bounds = array<i64: 32, 96>}, {transform_indices = @transform_2, window_bounds = array<i64: 16, 96>}]} {
    %c0 = arith.constant 0 : index
    %c0_0 = arith.constant 0 : index
    %0 = vector.load %arg1[%c0, %c0_0] : memref<16x32xf32, #tpu.memory_space<vmem>>, vector<16x32xf32>
    %1 = arith.truncf %0 : vector<16x32xf32> to vector<16x32xbf16>
    %c0_1 = arith.constant 0 : index
    %c0_2 = arith.constant 0 : index
    %2 = vector.load %arg2[%c0_1, %c0_2] : memref<32x96xbf16, #tpu.memory_space<vmem>>, vector<32x96xbf16>
    %cst = arith.constant dense<0.000000e+00> : vector<16x96xf32>
    %3 = tpu.matmul %1, %2, %cst {dimension_numbers = #tpu.dot_dimension_numbers<[1], [0], [0], [1], [0, 0, 1, 1], [], []>} : vector<16x32xbf16>, vector<32x96xbf16>, vector<16x96xf32> -> vector<16x96xf32>
    %4 = arith.truncf %3 : vector<16x96xf32> to vector<16x96xbf16>
    %c0_3 = arith.constant 0 : index
    %c0_4 = arith.constant 0 : index
    %5 = vector.load %arg3[%c0_3, %c0_4] : memref<16x96xbf16, #tpu.memory_space<vmem>>, vector<16x96xbf16>
    tpu.vector_store %arg3[%c0_3, %c0_4], %4 {strides = array<i32>} : memref<16x96xbf16, #tpu.memory_space<vmem>>, vector<16x96xbf16>,
    return
  }
  func.func @transform_0(%arg0: i32) -> (i32, i32) {
    %c0_i32 = arith.constant 0 : i32
    %c0_i32_0 = arith.constant 0 : i32
    return %arg0, %c0_i32 : i32, i32
  }
  func.func @transform_1(%arg0: i32) -> (i32, i32) {
    %c0_i32 = arith.constant 0 : i32
    %c0_i32_0 = arith.constant 0 : i32
    %c0_i32_1 = arith.constant 0 : i32
    return %c0_i32, %c0_i32_0 : i32, i32
  }
  func.func @transform_2(%arg0: i32) -> (i32, i32) {
    %c0_i32 = arith.constant 0 : i32
    %c0_i32_0 = arith.constant 0 : i32
    return %arg0, %c0_i32 : i32, i32
  }
}

module attributes {stable_mosaic.version = 11 : i64} {
  func.func @post_block_kernel(%arg0: i32, %arg1: memref<16x32xf32, #tpu.memory_space<vmem>>, %arg2: memref<16x32xbf16, #tpu.memory_space<vmem>>, %arg3: memref<32x32xbf16, #tpu.memory_space<vmem>>, %arg4: memref<1x32xf32, #tpu.memory_space<vmem>>, %arg5: memref<1x32xf32, #tpu.memory_space<vmem>>, %arg6: memref<32x64xbf16, #tpu.memory_space<vmem>>, %arg7: memref<1x64xf32, #tpu.memory_space<vmem>>, %arg8: memref<64x32xbf16, #tpu.memory_space<vmem>>, %arg9: memref<1x32xf32, #tpu.memory_space<vmem>>, %arg10: memref<1x32xf32, #tpu.memory_space<vmem>>, %arg11: memref<1x32xf32, #tpu.memory_space<vmem>>, %arg12: memref<16x32xf32, #tpu.memory_space<vmem>>) attributes {dimension_semantics = [#tpu.dimension_semantics<parallel>], iteration_bounds = array<i64: 1>, scalar_prefetch = 0 : i64, scratch_operands = 0 : i64, tpu.core_type = #tpu.core_type<tc>, window_params = [{transform_indices = @transform_0, window_bounds = array<i64: 16, 32>}, {transform_indices = @transform_1, window_bounds = array<i64: 16, 32>}, {pipeline_mode = #tpu.pipeline_mode<synchronous>, transform_indices = @transform_2, window_bounds = array<i64: 32, 32>}, {pipeline_mode = #tpu.pipeline_mode<synchronous>, transform_indices = @transform_3, window_bounds = array<i64: 1, 32>}, {pipeline_mode = #tpu.pipeline_mode<synchronous>, transform_indices = @transform_4, window_bounds = array<i64: 1, 32>}, {pipeline_mode = #tpu.pipeline_mode<synchronous>, transform_indices = @transform_5, window_bounds = array<i64: 32, 64>}, {pipeline_mode = #tpu.pipeline_mode<synchronous>, transform_indices = @transform_6, window_bounds = array<i64: 1, 64>}, {pipeline_mode = #tpu.pipeline_mode<synchronous>, transform_indices = @transform_7, window_bounds = array<i64: 64, 32>}, {pipeline_mode = #tpu.pipeline_mode<synchronous>, transform_indices = @transform_8, window_bounds = array<i64: 1, 32>}, {pipeline_mode = #tpu.pipeline_mode<synchronous>, transform_indices = @transform_9, window_bounds = array<i64: 1, 32>}, {pipeline_mode = #tpu.pipeline_mode<synchronous>, transform_indices = @transform_10, window_bounds = array<i64: 1, 32>}, {transform_indices = @transform_11, window_bounds = array<i64: 16, 32>}]} {
    %c0 = arith.constant 0 : index
    %c0_0 = arith.constant 0 : index
    %0 = vector.load %arg1[%c0, %c0_0] : memref<16x32xf32, #tpu.memory_space<vmem>>, vector<16x32xf32>
    %c0_1 = arith.constant 0 : index
    %c0_2 = arith.constant 0 : index
    %1 = vector.load %arg2[%c0_1, %c0_2] : memref<16x32xbf16, #tpu.memory_space<vmem>>, vector<16x32xbf16>
    %c0_3 = arith.constant 0 : index
    %c0_4 = arith.constant 0 : index
    %2 = vector.load %arg3[%c0_3, %c0_4] : memref<32x32xbf16, #tpu.memory_space<vmem>>, vector<32x32xbf16>
    %cst = arith.constant dense<0.000000e+00> : vector<16x32xf32>
    %3 = tpu.matmul %1, %2, %cst {dimension_numbers = #tpu.dot_dimension_numbers<[1], [0], [0], [1], [0, 0, 1, 1], [], []>} : vector<16x32xbf16>, vector<32x32xbf16>, vector<16x32xf32> -> vector<16x32xf32>
    %4 = arith.addf %0, %3 : vector<16x32xf32>
    %cst_5 = arith.constant dense<0.000000e+00> : vector<16xf32>
    %5 = vector.multi_reduction <add>, %4, %cst_5 [1] : vector<16x32xf32> to vector<16xf32>
    %6 = vector.shape_cast %5 : vector<16xf32> to vector<16x1xf32>
    %cst_6 = arith.constant 3.200000e+01 : f32
    %7 = vector.broadcast %cst_6 : f32 to vector<16x1xf32>
    %8 = arith.divf %6, %7 : vector<16x1xf32>
    %9 = vector.broadcast %8 : vector<16x1xf32> to vector<16x32xf32>
    %10 = arith.subf %4, %9 : vector<16x32xf32>
    %11 = arith.mulf %10, %10 : vector<16x32xf32>
    %cst_7 = arith.constant dense<0.000000e+00> : vector<16xf32>
    %12 = vector.multi_reduction <add>, %11, %cst_7 [1] : vector<16x32xf32> to vector<16xf32>
    %13 = vector.shape_cast %12 : vector<16xf32> to vector<16x1xf32>
    %cst_8 = arith.constant 3.200000e+01 : f32
    %14 = vector.broadcast %cst_8 : f32 to vector<16x1xf32>
    %15 = arith.divf %13, %14 : vector<16x1xf32>
    %16 = vector.broadcast %8 : vector<16x1xf32> to vector<16x32xf32>
    %17 = arith.subf %4, %16 : vector<16x32xf32>
    %cst_9 = arith.constant 9.99999974E-6 : f32
    %18 = vector.broadcast %cst_9 : f32 to vector<16x1xf32>
    %19 = arith.addf %15, %18 : vector<16x1xf32>
    %20 = math.rsqrt %19 : vector<16x1xf32>
    %21 = vector.broadcast %20 : vector<16x1xf32> to vector<16x32xf32>
    %22 = arith.mulf %17, %21 : vector<16x32xf32>
    %c0_10 = arith.constant 0 : index
    %c0_11 = arith.constant 0 : index
    %23 = vector.load %arg4[%c0_10, %c0_11] : memref<1x32xf32, #tpu.memory_space<vmem>>, vector<1x32xf32>
    %24 = vector.broadcast %23 : vector<1x32xf32> to vector<16x32xf32>
    %25 = arith.mulf %22, %24 : vector<16x32xf32>
    %c0_12 = arith.constant 0 : index
    %c0_13 = arith.constant 0 : index
    %26 = vector.load %arg5[%c0_12, %c0_13] : memref<1x32xf32, #tpu.memory_space<vmem>>, vector<1x32xf32>
    %27 = vector.broadcast %26 : vector<1x32xf32> to vector<16x32xf32>
    %28 = arith.addf %25, %27 : vector<16x32xf32>
    %29 = arith.truncf %28 : vector<16x32xf32> to vector<16x32xbf16>
    %c0_14 = arith.constant 0 : index
    %c0_15 = arith.constant 0 : index
    %30 = vector.load %arg6[%c0_14, %c0_15] : memref<32x64xbf16, #tpu.memory_space<vmem>>, vector<32x64xbf16>
    %cst_16 = arith.constant dense<0.000000e+00> : vector<16x64xf32>
    %31 = tpu.matmul %29, %30, %cst_16 {dimension_numbers = #tpu.dot_dimension_numbers<[1], [0], [0], [1], [0, 0, 1, 1], [], []>} : vector<16x32xbf16>, vector<32x64xbf16>, vector<16x64xf32> -> vector<16x64xf32>
    %c0_17 = arith.constant 0 : index
    %c0_18 = arith.constant 0 : index
    %32 = vector.load %arg7[%c0_17, %c0_18] : memref<1x64xf32, #tpu.memory_space<vmem>>, vector<1x64xf32>
    %33 = vector.broadcast %32 : vector<1x64xf32> to vector<16x64xf32>
    %34 = arith.addf %31, %33 : vector<16x64xf32>
    %cst_19 = arith.constant 5.000000e-01 : f32
    %35 = vector.broadcast %cst_19 : f32 to vector<16x64xf32>
    %36 = arith.mulf %35, %34 : vector<16x64xf32>
    %cst_20 = arith.constant 0.707106769 : f32
    %37 = vector.broadcast %cst_20 : f32 to vector<16x64xf32>
    %38 = arith.mulf %34, %37 : vector<16x64xf32>
    %39 = math.erf %38 : vector<16x64xf32>
    %cst_21 = arith.constant 1.000000e+00 : f32
    %40 = vector.broadcast %cst_21 : f32 to vector<16x64xf32>
    %41 = arith.addf %40, %39 : vector<16x64xf32>
    %42 = arith.mulf %36, %41 : vector<16x64xf32>
    %43 = arith.truncf %42 : vector<16x64xf32> to vector<16x64xbf16>
    %c0_22 = arith.constant 0 : index
    %c0_23 = arith.constant 0 : index
    %44 = vector.load %arg8[%c0_22, %c0_23] : memref<64x32xbf16, #tpu.memory_space<vmem>>, vector<64x32xbf16>
    %cst_24 = arith.constant dense<0.000000e+00> : vector<16x32xf32>
    %45 = tpu.matmul %43, %44, %cst_24 {dimension_numbers = #tpu.dot_dimension_numbers<[1], [0], [0], [1], [0, 0, 1, 1], [], []>} : vector<16x64xbf16>, vector<64x32xbf16>, vector<16x32xf32> -> vector<16x32xf32>
    %c0_25 = arith.constant 0 : index
    %c0_26 = arith.constant 0 : index
    %46 = vector.load %arg9[%c0_25, %c0_26] : memref<1x32xf32, #tpu.memory_space<vmem>>, vector<1x32xf32>
    %47 = vector.broadcast %46 : vector<1x32xf32> to vector<16x32xf32>
    %48 = arith.addf %45, %47 : vector<16x32xf32>
    %49 = arith.addf %28, %48 : vector<16x32xf32>
    %cst_27 = arith.constant dense<0.000000e+00> : vector<16xf32>
    %50 = vector.multi_reduction <add>, %49, %cst_27 [1] : vector<16x32xf32> to vector<16xf32>
    %51 = vector.shape_cast %50 : vector<16xf32> to vector<16x1xf32>
    %cst_28 = arith.constant 3.200000e+01 : f32
    %52 = vector.broadcast %cst_28 : f32 to vector<16x1xf32>
    %53 = arith.divf %51, %52 : vector<16x1xf32>
    %54 = vector.broadcast %53 : vector<16x1xf32> to vector<16x32xf32>
    %55 = arith.subf %49, %54 : vector<16x32xf32>
    %56 = arith.mulf %55, %55 : vector<16x32xf32>
    %cst_29 = arith.constant dense<0.000000e+00> : vector<16xf32>
    %57 = vector.multi_reduction <add>, %56, %cst_29 [1] : vector<16x32xf32> to vector<16xf32>
    %58 = vector.shape_cast %57 : vector<16xf32> to vector<16x1xf32>
    %cst_30 = arith.constant 3.200000e+01 : f32
    %59 = vector.broadcast %cst_30 : f32 to vector<16x1xf32>
    %60 = arith.divf %58, %59 : vector<16x1xf32>
    %61 = vector.broadcast %53 : vector<16x1xf32> to vector<16x32xf32>
    %62 = arith.subf %49, %61 : vector<16x32xf32>
    %cst_31 = arith.constant 9.99999974E-6 : f32
    %63 = vector.broadcast %cst_31 : f32 to vector<16x1xf32>
    %64 = arith.addf %60, %63 : vector<16x1xf32>
    %65 = math.rsqrt %64 : vector<16x1xf32>
    %66 = vector.broadcast %65 : vector<16x1xf32> to vector<16x32xf32>
    %67 = arith.mulf %62, %66 : vector<16x32xf32>
    %c0_32 = arith.constant 0 : index
    %c0_33 = arith.constant 0 : index
    %68 = vector.load %arg10[%c0_32, %c0_33] : memref<1x32xf32, #tpu.memory_space<vmem>>, vector<1x32xf32>
    %69 = vector.broadcast %68 : vector<1x32xf32> to vector<16x32xf32>
    %70 = arith.mulf %67, %69 : vector<16x32xf32>
    %c0_34 = arith.constant 0 : index
    %c0_35 = arith.constant 0 : index
    %71 = vector.load %arg11[%c0_34, %c0_35] : memref<1x32xf32, #tpu.memory_space<vmem>>, vector<1x32xf32>
    %72 = vector.broadcast %71 : vector<1x32xf32> to vector<16x32xf32>
    %73 = arith.addf %70, %72 : vector<16x32xf32>
    %c0_36 = arith.constant 0 : index
    %c0_37 = arith.constant 0 : index
    %74 = vector.load %arg12[%c0_36, %c0_37] : memref<16x32xf32, #tpu.memory_space<vmem>>, vector<16x32xf32>
    tpu.vector_store %arg12[%c0_36, %c0_37], %73 {strides = array<i32>} : memref<16x32xf32, #tpu.memory_space<vmem>>, vector<16x32xf32>,
    return
  }
  func.func @transform_0(%arg0: i32) -> (i32, i32) {
    %c0_i32 = arith.constant 0 : i32
    %c0_i32_0 = arith.constant 0 : i32
    return %arg0, %c0_i32 : i32, i32
  }
  func.func @transform_1(%arg0: i32) -> (i32, i32) {
    %c0_i32 = arith.constant 0 : i32
    %c0_i32_0 = arith.constant 0 : i32
    return %arg0, %c0_i32 : i32, i32
  }
  func.func @transform_2(%arg0: i32) -> (i32, i32) {
    %c0_i32 = arith.constant 0 : i32
    %c0_i32_0 = arith.constant 0 : i32
    %c0_i32_1 = arith.constant 0 : i32
    return %c0_i32, %c0_i32_0 : i32, i32
  }
  func.func @transform_3(%arg0: i32) -> (i32, i32) {
    %c0_i32 = arith.constant 0 : i32
    %c0_i32_0 = arith.constant 0 : i32
    %c0_i32_1 = arith.constant 0 : i32
    return %c0_i32, %c0_i32_0 : i32, i32
  }
  func.func @transform_4(%arg0: i32) -> (i32, i32) {
    %c0_i32 = arith.constant 0 : i32
    %c0_i32_0 = arith.constant 0 : i32
    %c0_i32_1 = arith.constant 0 : i32
    return %c0_i32, %c0_i32_0 : i32, i32
  }
  func.func @transform_5(%arg0: i32) -> (i32, i32) {
    %c0_i32 = arith.constant 0 : i32
    %c0_i32_0 = arith.constant 0 : i32
    %c0_i32_1 = arith.constant 0 : i32
    return %c0_i32, %c0_i32_0 : i32, i32
  }
  func.func @transform_6(%arg0: i32) -> (i32, i32) {
    %c0_i32 = arith.constant 0 : i32
    %c0_i32_0 = arith.constant 0 : i32
    %c0_i32_1 = arith.constant 0 : i32
    return %c0_i32, %c0_i32_0 : i32, i32
  }
  func.func @transform_7(%arg0: i32) -> (i32, i32) {
    %c0_i32 = arith.constant 0 : i32
    %c0_i32_0 = arith.constant 0 : i32
    %c0_i32_1 = arith.constant 0 : i32
    return %c0_i32, %c0_i32_0 : i32, i32
  }
  func.func @transform_8(%arg0: i32) -> (i32, i32) {
    %c0_i32 = arith.constant 0 : i32
    %c0_i32_0 = arith.constant 0 : i32
    %c0_i32_1 = arith.constant 0 : i32
    return %c0_i32, %c0_i32_0 : i32, i32
  }
  func.func @transform_9(%arg0: i32) -> (i32, i32) {
    %c0_i32 = arith.constant 0 : i32
    %c0_i32_0 = arith.constant 0 : i32
    %c0_i32_1 = arith.constant 0 : i32
    return %c0_i32, %c0_i32_0 : i32, i32
  }
  func.func @transform_10(%arg0: i32) -> (i32, i32) {
    %c0_i32 = arith.constant 0 : i32
    %c0_i32_0 = arith.constant 0 : i32
    %c0_i32_1 = arith.constant 0 : i32
    return %c0_i32, %c0_i32_0 : i32, i32
  }
  func.func @transform_11(%arg0: i32) -> (i32, i32) {
    %c0_i32 = arith.constant 0 : i32
    %c0_i32_0 = arith.constant 0 : i32
    return %arg0, %c0_i32 : i32, i32
  }
}

</mosaic_0001>

<llo_original>
// kernel: tpu_custom_call.1
$region0: #{tpu_custom_call.1}
  #allocation0 [shape = 'u32[]', space=smem, size = 0x4, offset = 0x4, fixed_abs, tag = 'smem constant byte address 0x4 - core index']
  #allocation1 [shape = 'u32[72,128]{1,0:T(1,128)}', space=vmem, size = 0x9000, scoped, tag = 'internal scratch']
  %s0 = inlined_call_operand.hbm [shape: f32[16,128], index: 0, kind: input, shape index: {}]
  %s1 = inlined_call_operand.hbm [shape: f32[8,128], index: 1, kind: input, shape index: {}]
  %s2 = inlined_call_operand.hbm [shape: f32[16,128], index: 2, kind: output, shape index: {}]
  %s3 = sld [smem:[#allocation0]]
  $region49: #{tpu_custom_call.1} parent=0
    _
  %s5 = ssub.s32 1, %s3
  %s6 = scalar_select 0, %s5, %s3
  $region1: #{tpu_custom_call.1} parent=0
    #allocation2 [shape = 'u8[8192]{0}', space=vmem, size = 0x2000, scoped, tag = 'input window, operand 0']
    #allocation3 [shape = 's32[2]{0}', space=sflag, size = 0x8, scoped, tag = 'scoped memory for tpu_custom_call.1']
    #allocation4 [shape = 's32[2]{0}', space=sflag, size = 0x8, scoped, tag = 'scoped memory for tpu_custom_call.1']
    #allocation5 [shape = 'u8[4096]{0}', space=vmem, size = 0x1000, scoped, tag = 'input window, operand 1, single buffered']
    #allocation6 [shape = 's32[1]{0}', space=sflag, size = 0x4, scoped, tag = 'scoped memory for tpu_custom_call.1']
    #allocation7 [shape = 'u8[8192]{0}', space=vmem, size = 0x2000, scoped, tag = 'output window, operand 0']
    %7 = vsyncpa [#allocation3], 0
    %s8 = scalar_lea.sflag [#allocation3], 1
    %9 = vsyncpa %s8, 0
    %10 = vsyncpa [#allocation6], 0
    %11 = vsyncpa [#allocation4], 0
    %s12 = scalar_lea.sflag [#allocation4], 1
    %13 = vsyncpa %s12, 0
    loop: start=0, step=1, limit=4
    $region2: #{tpu_custom_call.1} parent=1 // loop_pre_header
      _
    $region3: #{tpu_custom_call.1} parent=1 // loop_header
      %s15 = sphi 0, %s19
      %p16 = scmp.ge.s32.totalorder %s15, 4
      %s25 = sphi 0, %s27
      %s28 = sphi 0, %s25
      %s29 = sphi 0, %s28
      %s45 = sphi 0, %s29
      %s49 = sphi 0, %s49
      %s51 = sphi 0, %s49
      %s52 = sphi 0, %s51
      %s66 = sphi 0, %s52
      %s72 = sphi 0, %s74
      %s75 = sphi 0, %s72
      %s76 = sphi 0, %s75
      %s92 = sphi 0, %s76
    $region4: #{tpu_custom_call.1} parent=1 // loop_header_branch
      %18 = sbr.rel (%p16) target = $region8
    $region5: #{tpu_custom_call.1} parent=1 // loop_body
      %s20 = ssub.s32 %s15, 1
      %s21 = ssub.s32 %s15, 2
      %s22 = sadd.s32 %s15, 1
      %s23 = ssub.s32 %s15, %s22
      %p24 = scmp.eq.s32.totalorder %s23, 0
      %s26 = sadd.s32 %s25, 1
      %s27 = scalar_select %p24, %s25, %s26
      %p30 = pneg %p24
      %p31 = scmp.eq.s32.totalorder %s15, 1
      %p32 = por %p30, %p31
      %p33 = scmp.ne.s32.totalorder %s25, %s28
      %p34 = scmp.eq.s32.totalorder %s15, 0
      %p35 = por %p33, %p34
      %p36 = scmp.ne.s32.totalorder %s25, %s28
      %p37 = scmp.eq.s32.totalorder %s20, 1
      %p38 = por %p36, %p37
      %p39 = scmp.ne.s32.totalorder %s28, %s29
      %p40 = scmp.eq.s32.totalorder %s20, 0
      %p41 = por %p39, %p40
      %p42 = scmp.ne.s32.totalorder %s28, %s29
      %p43 = scmp.eq.s32.totalorder %s21, 1
      %p44 = por %p42, %p43
      %p46 = scmp.ne.s32.totalorder %s29, %s45
      %p47 = scmp.eq.s32.totalorder %s21, 0
      %p48 = por %p46, %p47
      %s50 = sadd.s32 %s49, 1
      %p53 = scmp.eq.s32.totalorder %s15, 1
      %p54 = scmp.ne.s32.totalorder %s49, %s51
      %p55 = scmp.eq.s32.totalorder %s15, 0
      %p56 = por %p54, %p55
      %p57 = scmp.ne.s32.totalorder %s49, %s51
      %p58 = scmp.eq.s32.totalorder %s20, 1
      %p59 = por %p57, %p58
      %p60 = scmp.ne.s32.totalorder %s51, %s52
      %p61 = scmp.eq.s32.totalorder %s20, 0
      %p62 = por %p60, %p61
      %p63 = scmp.ne.s32.totalorder %s51, %s52
      %p64 = scmp.eq.s32.totalorder %s21, 1
      %p65 = por %p63, %p64
      %p67 = scmp.ne.s32.totalorder %s52, %s66
      %p68 = scmp.eq.s32.totalorder %s21, 0
      %p69 = por %p67, %p68
      %s70 = ssub.s32 %s15, %s22
      %p71 = scmp.eq.s32.totalorder %s70, 0
      %s73 = sadd.s32 %s72, 1
      %s74 = scalar_select %p71, %s72, %s73
      %p77 = pneg %p71
      %p78 = scmp.eq.s32.totalorder %s15, 1
      %p79 = por %p77, %p78
      %p80 = scmp.ne.s32.totalorder %s72, %s75
      %p81 = scmp.eq.s32.totalorder %s15, 0
      %p82 = por %p80, %p81
      %p83 = scmp.ne.s32.totalorder %s72, %s75
      %p84 = scmp.eq.s32.totalorder %s20, 1
      %p85 = por %p83, %p84
      %p86 = scmp.ne.s32.totalorder %s75, %s76
      %p87 = scmp.eq.s32.totalorder %s20, 0
      %p88 = por %p86, %p87
      %p89 = scmp.ne.s32.totalorder %s75, %s76
      %p90 = scmp.eq.s32.totalorder %s21, 1
      %p91 = por %p89, %p90
      %p93 = scmp.ne.s32.totalorder %s76, %s92
      %p94 = scmp.eq.s32.totalorder %s21, 0
      %p95 = por %p93, %p94
      %p96 = scmp.le.s32.totalorder 1, %s15
      %p97 = scmp.lt.s32.totalorder %s15, 3
      %p98 = pnand %p96, %p97
      %p99 = pneg %p98
      // Predicated region
      $region9: #{tpu_custom_call.1} parent=5 // pred_check
        _
      $region10: #{tpu_custom_call.1} parent=5 // pred_check_branch
        %101 = sbr.rel (%p98) target = $region12
      $region11: #{tpu_custom_call.1} parent=5 // pred_region
        %s102 = ssub.s32 %s15, 1
        // Predicated region
        $region13: #{tpu_custom_call.1} parent=11 // pred_check
          %p103 = pneg %p62
        $region14: #{tpu_custom_call.1} parent=11 // pred_check_branch
          %105 = sbr.rel (%p103) target = $region16
        $region15: #{tpu_custom_call.1} parent=11 // pred_region
          %107 = vsyncadd [#allocation6], 0
          %s109 = sshll.u32 %s1, 4
          %s110 = int_to_ptr.hbm [resolvable:$true] %s109
          %s111 = sshll.u32 [#allocation5], 4
          %s112 = int_to_ptr.vmem [resolvable:$true] %s111
          %114 = dma.hbm_to_vmem [thread:$0]  %s110, 128, %s112, [#allocation6]
        $region16: #{tpu_custom_call.1} parent=11 // pred_fallthru
          _
      $region12: #{tpu_custom_call.1} parent=5 // pred_fallthru
        _
      %p115 = scmp.lt.s32.totalorder %s15, 2
      // Predicated region
      $region17: #{tpu_custom_call.1} parent=5 // pred_check
        %p116 = pneg %p115
      $region18: #{tpu_custom_call.1} parent=5 // pred_check_branch
        %118 = sbr.rel (%p116) target = $region20
      $region19: #{tpu_custom_call.1} parent=5 // pred_region
        // Predicated region
        $region21: #{tpu_custom_call.1} parent=19 // pred_check
          %p119 = pneg %p35
        $region22: #{tpu_custom_call.1} parent=19 // pred_check_branch
          %121 = sbr.rel (%p119) target = $region24
        $region23: #{tpu_custom_call.1} parent=19 // pred_region
          %s122 = sand.u32 %s25, 1
          %s123 = scalar_lea.sflag [#allocation3], %s122
          %s124 = sand.u32 %s25, 1
          %s125 = smul.addr %s124, 8
          %s126 = scalar_lea.vmem [#allocation2], %s125
          %128 = vsyncadd %s123, 0
          %s129 = smul.addr %s15, 8
          %s130 = scalar_lea.hbm %s0, %s129
          %s132 = sshll.u32 %s130, 4
          %s133 = int_to_ptr.hbm [resolvable:$true] %s132
          %s134 = sshll.u32 %s126, 4
          %s135 = int_to_ptr.vmem [resolvable:$true] %s134
          %137 = dma.hbm_to_vmem [thread:$0]  %s133, 128, %s135, %s123
        $region24: #{tpu_custom_call.1} parent=19 // pred_fallthru
          _
      $region20: #{tpu_custom_call.1} parent=5 // pred_fallthru
        _
      %p138 = scmp.le.s32.totalorder 1, %s15
      %p139 = scmp.lt.s32.totalorder %s15, 3
      %p140 = pnand %p138, %p139
      %p141 = pneg %p140
      // Predicated region
      $region25: #{tpu_custom_call.1} parent=5 // pred_check
        _
      $region26: #{tpu_custom_call.1} parent=5 // pred_check_branch
        %143 = sbr.rel (%p140) target = $region28
      $region27: #{tpu_custom_call.1} parent=5 // pred_region
        %s144 = ssub.s32 %s15, 1
        %s145 = sand.u32 %s28, 1
        %s146 = scalar_lea.sflag [#allocation3], %s145
        %s147 = sand.u32 %s28, 1
        %s148 = smul.addr %s147, 8
        %s149 = scalar_lea.vmem [#allocation2], %s148
        // Predicated region
        $region29: #{tpu_custom_call.1} parent=27 // pred_check
          %p150 = pneg %p41
        $region30: #{tpu_custom_call.1} parent=27 // pred_check_branch
          %152 = sbr.rel (%p150) target = $region32
        $region31: #{tpu_custom_call.1} parent=27 // pred_region
          %154 = dma.done %s146, 128
        $region32: #{tpu_custom_call.1} parent=27 // pred_fallthru
          _
        // Predicated region
        $region33: #{tpu_custom_call.1} parent=27 // pred_check
          %p155 = pneg %p62
        $region34: #{tpu_custom_call.1} parent=27 // pred_check_branch
          %157 = sbr.rel (%p155) target = $region36
        $region35: #{tpu_custom_call.1} parent=27 // pred_region
          %159 = dma.done [#allocation6], 128
        $region36: #{tpu_custom_call.1} parent=27 // pred_fallthru
          _
        %s160 = sand.u32 %s28, 1
        %s161 = scalar_lea.sflag [#allocation3], %s160
        %s162 = sand.u32 %s28, 1
        %s163 = smul.addr %s162, 8
        %s164 = scalar_lea.vmem [#allocation2], %s163
        %p165 = pneg %p41
        %p166 = pneg %p38
        %p167 = pneg %p62
        %p168 = pneg %p59
        %p169 = pneg %p88
        %p170 = pneg %p85
        %s171 = sand.u32 %s75, 1
        %s172 = scalar_lea.sflag [#allocation4], %s171
        %s173 = sand.u32 %s75, 1
        %s174 = smul.addr %s173, 8
        %s175 = scalar_lea.vmem [#allocation7], %s174
        %v176 = vld [vmem:[%s149] sm:$0xff]
        %v177 = vld [vmem:[#allocation5] sm:$0xff]
        %v178 = vadd.f32 %v176, %v177
        %179 = vst [vmem:[%s175] sm:$0xff] %v178
        %s180 = sand.u32 %s75, 1
        %s181 = scalar_lea.sflag [#allocation4], %s180
        %s182 = sand.u32 %s75, 1
        %s183 = smul.addr %s182, 8
        %s184 = scalar_lea.vmem [#allocation7], %s183
        // Predicated region
        $region37: #{tpu_custom_call.1} parent=27 // pred_check
          %p185 = pneg %p85
        $region38: #{tpu_custom_call.1} parent=27 // pred_check_branch
          %187 = sbr.rel (%p185) target = $region40
        $region39: #{tpu_custom_call.1} parent=27 // pred_region
          %189 = vsyncadd %s181, 0
          %s190 = smul.addr %s20, 8
          %s191 = scalar_lea.hbm %s2, %s190
          %s193 = sshll.u32 %s184, 4
          %s194 = int_to_ptr.vmem [resolvable:$true] %s193
          %s195 = sshll.u32 %s191, 4
          %s196 = int_to_ptr.hbm [resolvable:$true] %s195
          %198 = dma.vmem_to_hbm [thread:$0]  %s194, 128, %s196, %s181
        $region40: #{tpu_custom_call.1} parent=27 // pred_fallthru
          _
      $region28: #{tpu_custom_call.1} parent=5 // pred_fallthru
        _
      %p199 = scmp.le.s32.totalorder 2, %s15
      // Predicated region
      $region41: #{tpu_custom_call.1} parent=5 // pred_check
        %p200 = pneg %p199
      $region42: #{tpu_custom_call.1} parent=5 // pred_check_branch
        %202 = sbr.rel (%p200) target = $region44
      $region43: #{tpu_custom_call.1} parent=5 // pred_region
        %s203 = ssub.s32 %s15, 2
        // Predicated region
        $region45: #{tpu_custom_call.1} parent=43 // pred_check
          %p204 = pneg %p91
        $region46: #{tpu_custom_call.1} parent=43 // pred_check_branch
          %206 = sbr.rel (%p204) target = $region48
        $region47: #{tpu_custom_call.1} parent=43 // pred_region
          %s207 = sand.u32 %s76, 1
          %s208 = scalar_lea.sflag [#allocation4], %s207
          %s209 = sand.u32 %s76, 1
          %s210 = smul.addr %s209, 8
          %s211 = scalar_lea.vmem [#allocation7], %s210
          %213 = dma.done %s208, 128
        $region48: #{tpu_custom_call.1} parent=43 // pred_fallthru
          _
      $region44: #{tpu_custom_call.1} parent=5 // pred_fallthru
        _
    $region6: #{tpu_custom_call.1} parent=1 // loop_footer
      %s19 = sadd.s32 1, %s15
    $region7: #{tpu_custom_call.1} parent=1 // loop_footer_branch
      %14 = sbr.rel target = $region3
    $region8: #{tpu_custom_call.1} parent=1 // loop_exit
      _
    %214 = vsyncpa [#allocation3], 1
    %s215 = scalar_lea.sflag [#allocation3], 1
    %216 = vsyncpa %s215, 1
    %217 = vsyncpa [#allocation6], 1
    %218 = vsyncpa [#allocation4], 1
    %s219 = scalar_lea.sflag [#allocation4], 1
    %220 = vsyncpa %s219, 1

// kernel: transformer_encoder.6
$region0: #{transformer_encoder.6}
  #allocation0 [shape = 'u32[]', space=smem, size = 0x4, offset = 0x4, fixed_abs, tag = 'smem constant byte address 0x4 - core index']
  #allocation1 [shape = 'u32[72,128]{1,0:T(1,128)}', space=vmem, size = 0x9000, scoped, tag = 'internal scratch']
  %s0 = inlined_call_operand.hbm [shape: f32[16,32], index: 0, kind: input, shape index: {}]
  %s1 = inlined_call_operand.hbm [shape: bf16[32,96], index: 1, kind: input, shape index: {}]
  %s2 = inlined_call_operand.vmem [shape: bf16[16,96], index: 2, kind: output, shape index: {}]
  %s3 = sld [smem:[#allocation0]]
  $region26: #{transformer_encoder.6} parent=0
    _
  %s5 = ssub.s32 1, %s3
  %s6 = scalar_select 0, %s5, %s3
  $region1: #{transformer_encoder.6} parent=0
    #allocation2 [shape = 'u8[8192]{0}', space=vmem, size = 0x2000, scoped, tag = 'input window, operand 0, single buffered']
    #allocation3 [shape = 's32[1]{0}', space=sflag, size = 0x4, scoped, tag = 'scoped memory for transformer_encoder.6']
    #allocation4 [shape = 'u8[8192]{0}', space=vmem, size = 0x2000, scoped, tag = 'input window, operand 1, single buffered']
    #allocation5 [shape = 's32[1]{0}', space=sflag, size = 0x4, scoped, tag = 'scoped memory for transformer_encoder.6']
    %7 = vsyncpa [#allocation3], 0
    %8 = vsyncpa [#allocation5], 0
    // Predicated region
    $region2: #{transformer_encoder.6} parent=1 // pred_check
      _
    $region3: #{transformer_encoder.6} parent=1 // pred_check_branch
      %10 = sbr.rel (0) target = $region5
    $region4: #{transformer_encoder.6} parent=1 // pred_region
      %12 = vsyncadd [#allocation3], 0
      %s13 = sshll.u32 %s0, 4
      %s14 = int_to_ptr.hbm [resolvable:$true] %s13
      %s15 = sshll.u32 [#allocation2], 4
      %s16 = int_to_ptr.vmem [resolvable:$true] %s15
      %21 = dma.hbm_to_vmem [thread:$0]  %s14, 256, %s16, [#allocation3], 128, 128, 8
    $region5: #{transformer_encoder.6} parent=1 // pred_fallthru
      _
    // Predicated region
    $region6: #{transformer_encoder.6} parent=1 // pred_check
      _
    $region7: #{transformer_encoder.6} parent=1 // pred_check_branch
      %23 = sbr.rel (0) target = $region9
    $region8: #{transformer_encoder.6} parent=1 // pred_region
      %25 = vsyncadd [#allocation5], 0
      %s26 = sshll.u32 %s1, 4
      %s27 = int_to_ptr.hbm [resolvable:$true] %s26
      %s28 = sshll.u32 [#allocation4], 4
      %s29 = int_to_ptr.vmem [resolvable:$true] %s28
      %34 = dma.hbm_to_vmem [thread:$0]  %s27, 256, %s29, [#allocation5], 64, 64, 4
    $region9: #{transformer_encoder.6} parent=1 // pred_fallthru
      _
    // Predicated region
    $region10: #{transformer_encoder.6} parent=1 // pred_check
      _
    $region11: #{transformer_encoder.6} parent=1 // pred_check_branch
      %36 = sbr.rel (0) target = $region13
    $region12: #{transformer_encoder.6} parent=1 // pred_region
      %38 = dma.done [#allocation3], 256
    $region13: #{transformer_encoder.6} parent=1 // pred_fallthru
      _
    // Predicated region
    $region14: #{transformer_encoder.6} parent=1 // pred_check
      _
    $region15: #{transformer_encoder.6} parent=1 // pred_check_branch
      %40 = sbr.rel (0) target = $region17
    $region16: #{transformer_encoder.6} parent=1 // pred_region
      %42 = dma.done [#allocation5], 256
    $region17: #{transformer_encoder.6} parent=1 // pred_fallthru
      _
    %v44 = vld [vmem:[#allocation2] sm:$0xff]
    %v45 = vld [vmem:[#allocation2 + $0x8] sm:$0xff]
    %v46 = vpack.c.bf16 %v45, %v44
    %v47 = vld [vmem:[#allocation4] sm:$0xf]
    %v48 = vld [vmem:[#allocation4 + $0x4] sm:$0xf]
    %v49 = vld [vmem:[#allocation4 + $0x8] sm:$0xf]
    %v50 = vld [vmem:[#allocation4 + $0xc] sm:$0xf]
    %v55 = vunpack.c.l.b16 %v47
    %v56 = vunpack.c.l.b16 %v48
    %v57 = vunpack.c.l.b16 %v49
    %v58 = vunpack.c.l.b16 %v50
    %v59 = vpack.c.b16 %v56, %v55
    %v60 = vpack.c.b16 %v58, %v57
    %vm63 = vcmask 261120
    %v65 = vsel %vm63, %v46, 0
    %67 = vmatpush.bf16.msra.mxu0 0
    %68 = vmatpush.bf16.msra.mxu0 0
    %69 = vmatpush.bf16.msra.mxu0 0
    %70 = vmatpush.bf16.msra.mxu0 0
    %71 = vmatpush.bf16.msra.mxu0 0
    %72 = vmatpush.bf16.msra.mxu0 0
    %73 = vmatpush.bf16.msra.mxu0 %v60
    %74 = vmatpush.bf16.msra.mxu0 %v59
    %75 = vmatmul.bf16.gmra.mxu0 %v65
    %v76 = vpop.f32.mrf.mxu0
    %v77 = vadd.f32 0.0, %v76
    %v78 = vpop.f32.mrf.mxu0
    %v79 = vadd.f32 0.0, %v78
    %80 = vdwg.mxu0
    %v81 = vpack.c.bf16 %v77, %v77
    %v82 = vpack.c.bf16 %v79, %v79
    %vm83 = vcmask 781312
    %84 = vst.msk [vmem:[%s2] sm:$0xf] %vm83, %v81
    %85 = vst.msk [vmem:[%s2 + $0x4] sm:$0xf] %vm83, %v82
    // Predicated region
    $region18: #{transformer_encoder.6} parent=1 // pred_check
      _
    $region19: #{transformer_encoder.6} parent=1 // pred_check_branch
      %87 = sbr.rel (0) target = $region21
    $region20: #{transformer_encoder.6} parent=1 // pred_region
      _
    $region21: #{transformer_encoder.6} parent=1 // pred_fallthru
      _
    // Predicated region
    $region22: #{transformer_encoder.6} parent=1 // pred_check
      _
    $region23: #{transformer_encoder.6} parent=1 // pred_check_branch
      %89 = sbr.rel (0) target = $region25
    $region24: #{transformer_encoder.6} parent=1 // pred_region
      _
    $region25: #{transformer_encoder.6} parent=1 // pred_fallthru
      _
    %90 = vsyncpa [#allocation3], 1
    %91 = vsyncpa [#allocation5], 1

// kernel: transformer_encoder.8
$region0: #{transformer_encoder.8}
  #allocation0 [shape = 'u32[]', space=smem, size = 0x4, offset = 0x4, fixed_abs, tag = 'smem constant byte address 0x4 - core index']
  #allocation1 [shape = 'u32[72,128]{1,0:T(1,128)}', space=vmem, size = 0x9000, scoped, tag = 'internal scratch']
  %s0 = inlined_call_operand.vmem [shape: f32[16,32], index: 0, kind: input, shape index: {}]
  %s1 = inlined_call_operand.vmem [shape: bf16[16,32], index: 1, kind: input, shape index: {}]
  %s2 = inlined_call_operand.vmem [shape: bf16[32,32], index: 2, kind: input, shape index: {}]
  %s3 = inlined_call_operand.vmem [shape: f32[1,32], index: 3, kind: input, shape index: {}]
  %s4 = inlined_call_operand.vmem [shape: f32[1,32], index: 4, kind: input, shape index: {}]
  %s5 = inlined_call_operand.vmem [shape: bf16[32,64], index: 5, kind: input, shape index: {}]
  %s6 = inlined_call_operand.vmem [shape: f32[1,64], index: 6, kind: input, shape index: {}]
  %s7 = inlined_call_operand.vmem [shape: bf16[64,32], index: 7, kind: input, shape index: {}]
  %s8 = inlined_call_operand.vmem [shape: f32[1,32], index: 8, kind: input, shape index: {}]
  %s9 = inlined_call_operand.vmem [shape: f32[1,32], index: 9, kind: input, shape index: {}]
  %s10 = inlined_call_operand.vmem [shape: f32[1,32], index: 10, kind: input, shape index: {}]
  %s11 = inlined_call_operand.vmem [shape: f32[16,32], index: 11, kind: output, shape index: {}]
  %s12 = sld [smem:[#allocation0]]
  $region54: #{transformer_encoder.8} parent=0
    _
  %s14 = ssub.s32 1, %s12
  %s15 = scalar_select 0, %s14, %s12
  // Predicated region
  $region2: #{transformer_encoder.8} parent=0 // pred_check
    _
  $region3: #{transformer_encoder.8} parent=0 // pred_check_branch
    %17 = sbr.rel (0) target = $region5
  $region4: #{transformer_encoder.8} parent=0 // pred_region
    _
  $region5: #{transformer_encoder.8} parent=0 // pred_fallthru
    _
  // Predicated region
  $region6: #{transformer_encoder.8} parent=0 // pred_check
    _
  $region7: #{transformer_encoder.8} parent=0 // pred_check_branch
    %19 = sbr.rel (0) target = $region9
  $region8: #{transformer_encoder.8} parent=0 // pred_region
    _
  $region9: #{transformer_encoder.8} parent=0 // pred_fallthru
    _
  // Predicated region
  $region10: #{transformer_encoder.8} parent=0 // pred_check
    _
  $region11: #{transformer_encoder.8} parent=0 // pred_check_branch
    %21 = sbr.rel (0) target = $region13
  $region12: #{transformer_encoder.8} parent=0 // pred_region
    _
  $region13: #{transformer_encoder.8} parent=0 // pred_fallthru
    _
  // Predicated region
  $region14: #{transformer_encoder.8} parent=0 // pred_check
    _
  $region15: #{transformer_encoder.8} parent=0 // pred_check_branch
    %23 = sbr.rel (0) target = $region17
  $region16: #{transformer_encoder.8} parent=0 // pred_region
    _
  $region17: #{transformer_encoder.8} parent=0 // pred_fallthru
    _
  // Predicated region
  $region18: #{transformer_encoder.8} parent=0 // pred_check
    _
  $region19: #{transformer_encoder.8} parent=0 // pred_check_branch
    %25 = sbr.rel (0) target = $region21
  $region20: #{transformer_encoder.8} parent=0 // pred_region
    _
  $region21: #{transformer_encoder.8} parent=0 // pred_fallthru
    _
  // Predicated region
  $region22: #{transformer_encoder.8} parent=0 // pred_check
    _
  $region23: #{transformer_encoder.8} parent=0 // pred_check_branch
    %27 = sbr.rel (0) target = $region25
  $region24: #{transformer_encoder.8} parent=0 // pred_region
    _
  $region25: #{transformer_encoder.8} parent=0 // pred_fallthru
    _
  // Predicated region
  $region26: #{transformer_encoder.8} parent=0 // pred_check
    _
  $region27: #{transformer_encoder.8} parent=0 // pred_check_branch
    %29 = sbr.rel (0) target = $region29
  $region28: #{transformer_encoder.8} parent=0 // pred_region
    _
  $region29: #{transformer_encoder.8} parent=0 // pred_fallthru
    _
  // Predicated region
  $region30: #{transformer_encoder.8} parent=0 // pred_check
    _
  $region31: #{transformer_encoder.8} parent=0 // pred_check_branch
    %31 = sbr.rel (0) target = $region33
  $region32: #{transformer_encoder.8} parent=0 // pred_region
    _
  $region33: #{transformer_encoder.8} parent=0 // pred_fallthru
    _
  // Predicated region
  $region34: #{transformer_encoder.8} parent=0 // pred_check
    _
  $region35: #{transformer_encoder.8} parent=0 // pred_check_branch
    %33 = sbr.rel (0) target = $region37
  $region36: #{transformer_encoder.8} parent=0 // pred_region
    _
  $region37: #{transformer_encoder.8} parent=0 // pred_fallthru
    _
  // Predicated region
  $region38: #{transformer_encoder.8} parent=0 // pred_check
    _
  $region39: #{transformer_encoder.8} parent=0 // pred_check_branch
    %35 = sbr.rel (0) target = $region41
  $region40: #{transformer_encoder.8} parent=0 // pred_region
    _
  $region41: #{transformer_encoder.8} parent=0 // pred_fallthru
    _
  // Predicated region
  $region42: #{transformer_encoder.8} parent=0 // pred_check
    _
  $region43: #{transformer_encoder.8} parent=0 // pred_check_branch
    %37 = sbr.rel (0) target = $region45
  $region44: #{transformer_encoder.8} parent=0 // pred_region
    _
  $region45: #{transformer_encoder.8} parent=0 // pred_fallthru
    _
  %v39 = vld [vmem:[%s0] sm:$0xff]
  %v40 = vld [vmem:[%s0 + $0x8] sm:$0xff]
  %v41 = vld [vmem:[%s1] sm:$0xf]
  %v42 = vld [vmem:[%s1 + $0x4] sm:$0xf]
  %v43 = vld [vmem:[%s2] sm:$0xf]
  %v44 = vld [vmem:[%s2 + $0x4] sm:$0xf]
  %v45 = vld [vmem:[%s2 + $0x8] sm:$0xf]
  %v46 = vld [vmem:[%s2 + $0xc] sm:$0xf]
  %v49 = vunpack.c.l.b16 %v41
  %v50 = vunpack.c.l.b16 %v42
  %v51 = vpack.c.b16 %v50, %v49
  %v56 = vunpack.c.l.b16 %v43
  %v57 = vunpack.c.l.b16 %v44
  %v58 = vunpack.c.l.b16 %v45
  %v59 = vunpack.c.l.b16 %v46
  %v60 = vpack.c.b16 %v57, %v56
  %v61 = vpack.c.b16 %v59, %v58
  %vm64 = vcmask 261120
  %v66 = vsel %vm64, %v51, 0
  %68 = vmatpush.bf16.msra.mxu0 0
  %69 = vmatpush.bf16.msra.mxu0 0
  %70 = vmatpush.bf16.msra.mxu0 0
  %71 = vmatpush.bf16.msra.mxu0 0
  %72 = vmatpush.bf16.msra.mxu0 0
  %73 = vmatpush.bf16.msra.mxu0 0
  %74 = vmatpush.bf16.msra.mxu0 %v61
  %75 = vmatpush.bf16.msra.mxu0 %v60
  %76 = vmatmul.bf16.gmra.mxu0 %v66
  %v77 = vpop.f32.mrf.mxu0
  %v78 = vadd.f32 0.0, %v77
  %v79 = vpop.f32.mrf.mxu0
  %v80 = vadd.f32 0.0, %v79
  %81 = vdwg.mxu0
  %v82 = vadd.f32 %v39, %v78
  %v83 = vadd.f32 %v40, %v80
  %v84 = vsel %vm64, %v82, 0.0
  %85 = vadd.xlane.f32.xlu0 %v84
  %v86 = vpop.xlane.xlu0 %85
  %v87 = vsel %vm64, %v83, 0.0
  %88 = vadd.xlane.f32.xlu0 %v87
  %v89 = vpop.xlane.xlu0 %88
  %v90 = vrcp.pop 32.0
  %v91 = vmul.f32 32.0, %v90
  %v92 = vsub.f32 1.0, %v91
  %v93 = vmul.f32 %v90, %v92
  %v94 = vadd.f32 %v90, %v93
  %vm95 = vweird.f32 %v90
  %v96 = vsel %vm95, %v90, %v94
  %v97 = vmul.f32 %v86, %v96
  %v98 = vmul.f32 %v89, %v96
  %v99 = vsub.f32 %v82, %v97
  %v100 = vsub.f32 %v83, %v98
  %v101 = vmul.f32 %v99, %v99
  %v102 = vmul.f32 %v100, %v100
  %v103 = vsel %vm64, %v101, 0.0
  %104 = vadd.xlane.f32.xlu0 %v103
  %v105 = vpop.xlane.xlu0 %104
  %v106 = vsel %vm64, %v102, 0.0
  %107 = vadd.xlane.f32.xlu0 %v106
  %v108 = vpop.xlane.xlu0 %107
  %v109 = vmul.f32 %v105, %v96
  %v110 = vmul.f32 %v108, %v96
  %v111 = vadd.f32 %v109, 1e-05
  %v112 = vadd.f32 %v110, 1e-05
  %v113 = vrsqrt.pop %v111
  %v114 = vmul.f32 %v113, %v111
  %v115 = vmul.f32 %v114, %v113
  %v116 = vmul.f32 0.5, %v115
  %v117 = vsub.f32 1.5, %v116
  %v118 = vmul.f32 %v113, %v117
  %vm119 = vweird.f32 %v111
  %vm120 = vweird.f32 %v113
  %vm121 = vmor %vm119, %vm120
  %v122 = vsel %vm121, %v113, %v118
  %v123 = vrsqrt.pop %v112
  %v124 = vmul.f32 %v123, %v112
  %v125 = vmul.f32 %v124, %v123
  %v126 = vmul.f32 0.5, %v125
  %v127 = vsub.f32 1.5, %v126
  %v128 = vmul.f32 %v123, %v127
  %vm129 = vweird.f32 %v112
  %vm130 = vweird.f32 %v123
  %vm131 = vmor %vm129, %vm130
  %v132 = vsel %vm131, %v123, %v128
  %v133 = vmul.f32 %v99, %v122
  %v134 = vmul.f32 %v100, %v132
  %v135 = vld [vmem:[%s3] sm:$0x1]
  %v137 = vperm.slane %v135, 0
  %v139 = vmul.f32 %v133, %v137
  %v140 = vmul.f32 %v134, %v137
  %v141 = vld [vmem:[%s4] sm:$0x1]
  %v143 = vperm.slane %v141, 0
  %v145 = vadd.f32 %v139, %v143
  %v146 = vadd.f32 %v140, %v143
  %v147 = vpack.c.bf16 %v146, %v145
  %v148 = vld [vmem:[%s5] sm:$0xf]
  %v149 = vld [vmem:[%s5 + $0x4] sm:$0xf]
  %v150 = vld [vmem:[%s5 + $0x8] sm:$0xf]
  %v151 = vld [vmem:[%s5 + $0xc] sm:$0xf]
  %v152 = vld [vmem:[%s6] sm:$0x1]
  %v154 = vperm.slane %v152, 0
  %v160 = vunpack.c.l.b16 %v148
  %v161 = vunpack.c.l.b16 %v149
  %v162 = vunpack.c.l.b16 %v150
  %v163 = vunpack.c.l.b16 %v151
  %v164 = vpack.c.b16 %v161, %v160
  %v165 = vpack.c.b16 %v163, %v162
  %v169 = vsel %vm64, %v147, 0
  %171 = vmatpush.bf16.msra.mxu0 0
  %172 = vmatpush.bf16.msra.mxu0 0
  %173 = vmatpush.bf16.msra.mxu0 0
  %174 = vmatpush.bf16.msra.mxu0 0
  %175 = vmatpush.bf16.msra.mxu0 0
  %176 = vmatpush.bf16.msra.mxu0 0
  %177 = vmatpush.bf16.msra.mxu0 %v165
  %178 = vmatpush.bf16.msra.mxu0 %v164
  %179 = vmatmul.bf16.gmra.mxu0 %v169
  %v180 = vpop.f32.mrf.mxu0
  %v181 = vadd.f32 %v154, %v180
  %v182 = vpop.f32.mrf.mxu0
  %v183 = vadd.f32 %v154, %v182
  %184 = vdwg.mxu0
  %v185 = vmul.f32 %v181, 0.5
  %v186 = vmul.f32 %v183, 0.5
  %v187 = vmul.f32 %v181, 0.70710677
  %v188 = vmul.f32 %v183, 0.70710677
  %v189 = vmul.f32 %v187, %v187
  %v190 = vmin.f32 16.0, %v189
  %v191 = vmul.f32 %v190, 2.1237322e-06
  %v192 = vadd.f32 %v191, 0.00028619796
  %v193 = vmul.f32 %v190, %v192
  %v194 = vadd.f32 %v193, 0.0036580483
  %v195 = vmul.f32 %v190, %v194
  %v196 = vadd.f32 %v195, 0.05243302
  %v197 = vmul.f32 %v190, %v196
  %v198 = vadd.f32 %v197, 0.18741608
  %v199 = vmul.f32 %v190, %v198
  %v200 = vadd.f32 %v199, 1.1283791
  %v201 = vmul.f32 %v187, %v200
  %v202 = vmul.f32 %v190, 3.8918573e-05
  %v203 = vadd.f32 %v202, 0.001143296
  %v204 = vmul.f32 %v190, %v203
  %v205 = vadd.f32 %v204, 0.014752088
  %v206 = vmul.f32 %v190, %v205
  %v207 = vadd.f32 %v206, 0.112945676
  %v208 = vmul.f32 %v190, %v207
  %v209 = vadd.f32 %v208, 0.4994258
  %v210 = vmul.f32 %v190, %v209
  %v211 = vadd.f32 %v210, 1.0
  %v212 = vrcp.pop %v211
  %v213 = vmul.f32 %v211, %v212
  %v214 = vsub.f32 1.0, %v213
  %v215 = vmul.f32 %v212, %v214
  %v216 = vadd.f32 %v212, %v215
  %vm217 = vweird.f32 %v211
  %vm218 = vweird.f32 %v212
  %vm219 = vmor %vm217, %vm218
  %v220 = vsel %vm219, %v212, %v216
  %v221 = vand.u32 2147483647, %v211
  %vm222 = vcmp.eq.f32.partialorder %v221, 8.507059e+37
  %v223 = vand.u32 %v211, 2147483648
  %v224 = vor.u32 1.1754944e-38, %v223
  %v225 = vsel %vm222, %v224, %v220
  %v226 = vmul.f32 %v201, %v225
  %v227 = vmin.f32 %v226, 1.0
  %v228 = vmax.f32 %v227, -1.0
  %v229 = vmul.f32 %v188, %v188
  %v230 = vmin.f32 16.0, %v229
  %v231 = vmul.f32 %v230, 2.1237322e-06
  %v232 = vadd.f32 %v231, 0.00028619796
  %v233 = vmul.f32 %v230, %v232
  %v234 = vadd.f32 %v233, 0.0036580483
  %v235 = vmul.f32 %v230, %v234
  %v236 = vadd.f32 %v235, 0.05243302
  %v237 = vmul.f32 %v230, %v236
  %v238 = vadd.f32 %v237, 0.18741608
  %v239 = vmul.f32 %v230, %v238
  %v240 = vadd.f32 %v239, 1.1283791
  %v241 = vmul.f32 %v188, %v240
  %v242 = vmul.f32 %v230, 3.8918573e-05
  %v243 = vadd.f32 %v242, 0.001143296
  %v244 = vmul.f32 %v230, %v243
  %v245 = vadd.f32 %v244, 0.014752088
  %v246 = vmul.f32 %v230, %v245
  %v247 = vadd.f32 %v246, 0.112945676
  %v248 = vmul.f32 %v230, %v247
  %v249 = vadd.f32 %v248, 0.4994258
  %v250 = vmul.f32 %v230, %v249
  %v251 = vadd.f32 %v250, 1.0
  %v252 = vrcp.pop %v251
  %v253 = vmul.f32 %v251, %v252
  %v254 = vsub.f32 1.0, %v253
  %v255 = vmul.f32 %v252, %v254
  %v256 = vadd.f32 %v252, %v255
  %vm257 = vweird.f32 %v251
  %vm258 = vweird.f32 %v252
  %vm259 = vmor %vm257, %vm258
  %v260 = vsel %vm259, %v252, %v256
  %v261 = vand.u32 2147483647, %v251
  %vm262 = vcmp.eq.f32.partialorder %v261, 8.507059e+37
  %v263 = vand.u32 %v251, 2147483648
  %v264 = vor.u32 1.1754944e-38, %v263
  %v265 = vsel %vm262, %v264, %v260
  %v266 = vmul.f32 %v241, %v265
  %v267 = vmin.f32 %v266, 1.0
  %v268 = vmax.f32 %v267, -1.0
  %v269 = vadd.f32 %v228, 1.0
  %v270 = vadd.f32 %v268, 1.0
  %v271 = vmul.f32 %v185, %v269
  %v272 = vmul.f32 %v186, %v270
  %v273 = vpack.c.bf16 %v272, %v271
  %v274 = vld [vmem:[%s7] sm:$0xf]
  %v275 = vld [vmem:[%s7 + $0x4] sm:$0xf]
  %v276 = vld [vmem:[%s7 + $0x8] sm:$0xf]
  %v277 = vld [vmem:[%s7 + $0xc] sm:$0xf]
  %v278 = vld [vmem:[%s7 + $0x10] sm:$0xf]
  %v279 = vld [vmem:[%s7 + $0x14] sm:$0xf]
  %v280 = vld [vmem:[%s7 + $0x18] sm:$0xf]
  %v281 = vld [vmem:[%s7 + $0x1c] sm:$0xf]
  %v282 = vld [vmem:[%s8] sm:$0x1]
  %v284 = vperm.slane %v282, 0
  %v294 = vunpack.c.l.b16 %v274
  %v295 = vunpack.c.l.b16 %v275
  %v296 = vunpack.c.l.b16 %v276
  %v297 = vunpack.c.l.b16 %v277
  %v298 = vunpack.c.l.b16 %v278
  %v299 = vunpack.c.l.b16 %v279
  %v300 = vunpack.c.l.b16 %v280
  %v301 = vunpack.c.l.b16 %v281
  %v302 = vpack.c.b16 %v295, %v294
  %v303 = vpack.c.b16 %v297, %v296
  %v304 = vpack.c.b16 %v299, %v298
  %v305 = vpack.c.b16 %v301, %v300
  %vm310 = vcmask 523264
  %v312 = vsel %vm310, %v273, 0
  %314 = vmatpush.bf16.msra.mxu0 0
  %315 = vmatpush.bf16.msra.mxu0 0
  %316 = vmatpush.bf16.msra.mxu0 0
  %317 = vmatpush.bf16.msra.mxu0 0
  %318 = vmatpush.bf16.msra.mxu0 %v305
  %319 = vmatpush.bf16.msra.mxu0 %v304
  %320 = vmatpush.bf16.msra.mxu0 %v303
  %321 = vmatpush.bf16.msra.mxu0 %v302
  %322 = vmatmul.bf16.gmra.mxu0 %v312
  %v323 = vpop.f32.mrf.mxu0
  %v324 = vadd.f32 %v284, %v323
  %v325 = vpop.f32.mrf.mxu0
  %v326 = vadd.f32 %v284, %v325
  %327 = vdwg.mxu0
  %v328 = vadd.f32 %v145, %v324
  %v329 = vadd.f32 %v146, %v326
  %v330 = vsel %vm64, %v328, 0.0
  %331 = vadd.xlane.f32.xlu0 %v330
  %v332 = vpop.xlane.xlu0 %331
  %v333 = vsel %vm64, %v329, 0.0
  %334 = vadd.xlane.f32.xlu0 %v333
  %v335 = vpop.xlane.xlu0 %334
  %v336 = vmul.f32 %v332, %v96
  %v337 = vmul.f32 %v335, %v96
  %v338 = vsub.f32 %v328, %v336
  %v339 = vsub.f32 %v329, %v337
  %v340 = vmul.f32 %v338, %v338
  %v341 = vmul.f32 %v339, %v339
  %v342 = vsel %vm64, %v340, 0.0
  %343 = vadd.xlane.f32.xlu0 %v342
  %v344 = vpop.xlane.xlu0 %343
  %v345 = vsel %vm64, %v341, 0.0
  %346 = vadd.xlane.f32.xlu0 %v345
  %v347 = vpop.xlane.xlu0 %346
  %v348 = vmul.f32 %v344, %v96
  %v349 = vmul.f32 %v347, %v96
  %v350 = vadd.f32 %v348, 1e-05
  %v351 = vadd.f32 %v349, 1e-05
  %v352 = vrsqrt.pop %v350
  %v353 = vmul.f32 %v352, %v350
  %v354 = vmul.f32 %v353, %v352
  %v355 = vmul.f32 0.5, %v354
  %v356 = vsub.f32 1.5, %v355
  %v357 = vmul.f32 %v352, %v356
  %vm358 = vweird.f32 %v350
  %vm359 = vweird.f32 %v352
  %vm360 = vmor %vm358, %vm359
  %v361 = vsel %vm360, %v352, %v357
  %v362 = vrsqrt.pop %v351
  %v363 = vmul.f32 %v362, %v351
  %v364 = vmul.f32 %v363, %v362
  %v365 = vmul.f32 0.5, %v364
  %v366 = vsub.f32 1.5, %v365
  %v367 = vmul.f32 %v362, %v366
  %vm368 = vweird.f32 %v351
  %vm369 = vweird.f32 %v362
  %vm370 = vmor %vm368, %vm369
  %v371 = vsel %vm370, %v362, %v367
  %v372 = vmul.f32 %v338, %v361
  %v373 = vmul.f32 %v339, %v371
  %v374 = vld [vmem:[%s9] sm:$0x1]
  %v376 = vperm.slane %v374, 0
  %v378 = vmul.f32 %v372, %v376
  %v379 = vmul.f32 %v373, %v376
  %v380 = vld [vmem:[%s10] sm:$0x1]
  %v382 = vperm.slane %v380, 0
  %v384 = vadd.f32 %v378, %v382
  %v385 = vadd.f32 %v379, %v382
  %386 = vst.msk [vmem:[%s11] sm:$0xff] %vm64, %v384
  %387 = vst.msk [vmem:[%s11 + $0x8] sm:$0xff] %vm64, %v385
  // Predicated region
  $region46: #{transformer_encoder.8} parent=0 // pred_check
    _
  $region47: #{transformer_encoder.8} parent=0 // pred_check_branch
    %389 = sbr.rel (0) target = $region49
  $region48: #{transformer_encoder.8} parent=0 // pred_region
    _
  $region49: #{transformer_encoder.8} parent=0 // pred_fallthru
    _
  // Predicated region
  $region50: #{transformer_encoder.8} parent=0 // pred_check
    _
  $region51: #{transformer_encoder.8} parent=0 // pred_check_branch
    %391 = sbr.rel (0) target = $region53
  $region52: #{transformer_encoder.8} parent=0 // pred_region
    _
  $region53: #{transformer_encoder.8} parent=0 // pred_fallthru
    _

// kernel: transformer_encoder.9
$region0: #{transformer_encoder.9}
  #allocation0 [shape = 'u32[]', space=smem, size = 0x4, offset = 0x4, fixed_abs, tag = 'smem constant byte address 0x4 - core index']
  #allocation1 [shape = 'u32[72,128]{1,0:T(1,128)}', space=vmem, size = 0x9000, scoped, tag = 'internal scratch']
  %s0 = inlined_call_operand.vmem [shape: f32[16,32], index: 0, kind: input, shape index: {}]
  %s1 = inlined_call_operand.vmem [shape: bf16[32,96], index: 1, kind: input, shape index: {}]
  %s2 = inlined_call_operand.vmem [shape: bf16[16,96], index: 2, kind: output, shape index: {}]
  %s3 = sld [smem:[#allocation0]]
  $region18: #{transformer_encoder.9} parent=0
    _
  %s5 = ssub.s32 1, %s3
  %s6 = scalar_select 0, %s5, %s3
  // Predicated region
  $region2: #{transformer_encoder.9} parent=0 // pred_check
    _
  $region3: #{transformer_encoder.9} parent=0 // pred_check_branch
    %8 = sbr.rel (0) target = $region5
  $region4: #{transformer_encoder.9} parent=0 // pred_region
    _
  $region5: #{transformer_encoder.9} parent=0 // pred_fallthru
    _
  // Predicated region
  $region6: #{transformer_encoder.9} parent=0 // pred_check
    _
  $region7: #{transformer_encoder.9} parent=0 // pred_check_branch
    %10 = sbr.rel (0) target = $region9
  $region8: #{transformer_encoder.9} parent=0 // pred_region
    _
  $region9: #{transformer_encoder.9} parent=0 // pred_fallthru
    _
  %v12 = vld [vmem:[%s0] sm:$0xff]
  %v13 = vld [vmem:[%s0 + $0x8] sm:$0xff]
  %v14 = vpack.c.bf16 %v13, %v12
  %v15 = vld [vmem:[%s1] sm:$0xf]
  %v16 = vld [vmem:[%s1 + $0x4] sm:$0xf]
  %v17 = vld [vmem:[%s1 + $0x8] sm:$0xf]
  %v18 = vld [vmem:[%s1 + $0xc] sm:$0xf]
  %v23 = vunpack.c.l.b16 %v15
  %v24 = vunpack.c.l.b16 %v16
  %v25 = vunpack.c.l.b16 %v17
  %v26 = vunpack.c.l.b16 %v18
  %v27 = vpack.c.b16 %v24, %v23
  %v28 = vpack.c.b16 %v26, %v25
  %vm31 = vcmask 261120
  %v33 = vsel %vm31, %v14, 0
  %35 = vmatpush.bf16.msra.mxu0 0
  %36 = vmatpush.bf16.msra.mxu0 0
  %37 = vmatpush.bf16.msra.mxu0 0
  %38 = vmatpush.bf16.msra.mxu0 0
  %39 = vmatpush.bf16.msra.mxu0 0
  %40 = vmatpush.bf16.msra.mxu0 0
  %41 = vmatpush.bf16.msra.mxu0 %v28
  %42 = vmatpush.bf16.msra.mxu0 %v27
  %43 = vmatmul.bf16.gmra.mxu0 %v33
  %v44 = vpop.f32.mrf.mxu0
  %v45 = vadd.f32 0.0, %v44
  %v46 = vpop.f32.mrf.mxu0
  %v47 = vadd.f32 0.0, %v46
  %48 = vdwg.mxu0
  %v49 = vpack.c.bf16 %v45, %v45
  %v50 = vpack.c.bf16 %v47, %v47
  %vm51 = vcmask 781312
  %52 = vst.msk [vmem:[%s2] sm:$0xf] %vm51, %v49
  %53 = vst.msk [vmem:[%s2 + $0x4] sm:$0xf] %vm51, %v50
  // Predicated region
  $region10: #{transformer_encoder.9} parent=0 // pred_check
    _
  $region11: #{transformer_encoder.9} parent=0 // pred_check_branch
    %55 = sbr.rel (0) target = $region13
  $region12: #{transformer_encoder.9} parent=0 // pred_region
    _
  $region13: #{transformer_encoder.9} parent=0 // pred_fallthru
    _
  // Predicated region
  $region14: #{transformer_encoder.9} parent=0 // pred_check
    _
  $region15: #{transformer_encoder.9} parent=0 // pred_check_branch
    %57 = sbr.rel (0) target = $region17
  $region16: #{transformer_encoder.9} parent=0 // pred_region
    _
  $region17: #{transformer_encoder.9} parent=0 // pred_fallthru
    _

// kernel: transformer_encoder.7
$region0: #{transformer_encoder.7}
  #allocation0 [shape = 'u32[]', space=smem, size = 0x4, offset = 0x4, fixed_abs, tag = 'smem constant byte address 0x4 - core index']
  #allocation1 [shape = 'u32[72,128]{1,0:T(1,128)}', space=vmem, size = 0x9000, scoped, tag = 'internal scratch']
  %s0 = inlined_call_operand.vmem [shape: bf16[2,8,96], index: 0, kind: input, shape index: {}]
  %s1 = inlined_call_operand.vmem [shape: bf16[2,8,32], index: 1, kind: output, shape index: {}]
  %s2 = sld [smem:[#allocation0]]
  $region37: #{transformer_encoder.7} parent=0
    _
  %s4 = ssub.s32 1, %s2
  %s5 = scalar_select 0, %s4, %s2
  loop: start=0, step=1, limit=4
  $region2: #{transformer_encoder.7} parent=0 // loop_pre_header
    _
  $region3: #{transformer_encoder.7} parent=0 // loop_header
    %s7 = sphi 0, %s11
    %p8 = scmp.ge.s32.totalorder %s7, 4
    %s17 = sphi 0, %s19
    %s20 = sphi 0, %s17
    %s21 = sphi 0, %s20
    %s37 = sphi 0, %s21
    %s43 = sphi 0, %s45
    %s46 = sphi 0, %s43
    %s47 = sphi 0, %s46
    %s63 = sphi 0, %s47
  $region4: #{transformer_encoder.7} parent=0 // loop_header_branch
    %10 = sbr.rel (%p8) target = $region8
  $region5: #{transformer_encoder.7} parent=0 // loop_body
    %s12 = ssub.s32 %s7, 1
    %s13 = ssub.s32 %s7, 2
    %s14 = sadd.s32 %s7, 1
    %s15 = ssub.s32 %s7, %s14
    %p16 = scmp.eq.s32.totalorder %s15, 0
    %s18 = sadd.s32 %s17, 1
    %s19 = scalar_select %p16, %s17, %s18
    %p22 = pneg %p16
    %p23 = scmp.eq.s32.totalorder %s7, 1
    %p24 = por %p22, %p23
    %p25 = scmp.ne.s32.totalorder %s17, %s20
    %p26 = scmp.eq.s32.totalorder %s7, 0
    %p27 = por %p25, %p26
    %p28 = scmp.ne.s32.totalorder %s17, %s20
    %p29 = scmp.eq.s32.totalorder %s12, 1
    %p30 = por %p28, %p29
    %p31 = scmp.ne.s32.totalorder %s20, %s21
    %p32 = scmp.eq.s32.totalorder %s12, 0
    %p33 = por %p31, %p32
    %p34 = scmp.ne.s32.totalorder %s20, %s21
    %p35 = scmp.eq.s32.totalorder %s13, 1
    %p36 = por %p34, %p35
    %p38 = scmp.ne.s32.totalorder %s21, %s37
    %p39 = scmp.eq.s32.totalorder %s13, 0
    %p40 = por %p38, %p39
    %s41 = ssub.s32 %s7, %s14
    %p42 = scmp.eq.s32.totalorder %s41, 0
    %s44 = sadd.s32 %s43, 1
    %s45 = scalar_select %p42, %s43, %s44
    %p48 = pneg %p42
    %p49 = scmp.eq.s32.totalorder %s7, 1
    %p50 = por %p48, %p49
    %p51 = scmp.ne.s32.totalorder %s43, %s46
    %p52 = scmp.eq.s32.totalorder %s7, 0
    %p53 = por %p51, %p52
    %p54 = scmp.ne.s32.totalorder %s43, %s46
    %p55 = scmp.eq.s32.totalorder %s12, 1
    %p56 = por %p54, %p55
    %p57 = scmp.ne.s32.totalorder %s46, %s47
    %p58 = scmp.eq.s32.totalorder %s12, 0
    %p59 = por %p57, %p58
    %p60 = scmp.ne.s32.totalorder %s46, %s47
    %p61 = scmp.eq.s32.totalorder %s13, 1
    %p62 = por %p60, %p61
    %p64 = scmp.ne.s32.totalorder %s47, %s63
    %p65 = scmp.eq.s32.totalorder %s13, 0
    %p66 = por %p64, %p65
    %p67 = scmp.le.s32.totalorder 1, %s7
    %p68 = scmp.lt.s32.totalorder %s7, 3
    %p69 = pnand %p67, %p68
    %p70 = pneg %p69
    // Predicated region
    $region9: #{transformer_encoder.7} parent=5 // pred_check
      _
    $region10: #{transformer_encoder.7} parent=5 // pred_check_branch
      %72 = sbr.rel (%p69) target = $region12
    $region11: #{transformer_encoder.7} parent=5 // pred_region
      %s73 = ssub.s32 %s7, 1
    $region12: #{transformer_encoder.7} parent=5 // pred_fallthru
      _
    %p74 = scmp.lt.s32.totalorder %s7, 2
    // Predicated region
    $region13: #{transformer_encoder.7} parent=5 // pred_check
      %p75 = pneg %p74
    $region14: #{transformer_encoder.7} parent=5 // pred_check_branch
      %77 = sbr.rel (%p75) target = $region16
    $region15: #{transformer_encoder.7} parent=5 // pred_region
      // Predicated region
      $region17: #{transformer_encoder.7} parent=15 // pred_check
        %p78 = pneg %p27
      $region18: #{transformer_encoder.7} parent=15 // pred_check_branch
        %80 = sbr.rel (%p78) target = $region20
      $region19: #{transformer_encoder.7} parent=15 // pred_region
        %p81 = scmp.lt.s32.totalorder %s7, 1
        %s82 = scalar_select %p81, %s7, 1
        %s83 = smul.addr %s82, 4
        %s84 = scalar_lea.vmem %s0, %s83
      $region20: #{transformer_encoder.7} parent=15 // pred_fallthru
        _
    $region16: #{transformer_encoder.7} parent=5 // pred_fallthru
      _
    %p85 = scmp.le.s32.totalorder 1, %s7
    %p86 = scmp.lt.s32.totalorder %s7, 3
    %p87 = pnand %p85, %p86
    %p88 = pneg %p87
    // Predicated region
    $region21: #{transformer_encoder.7} parent=5 // pred_check
      _
    $region22: #{transformer_encoder.7} parent=5 // pred_check_branch
      %90 = sbr.rel (%p87) target = $region24
    $region23: #{transformer_encoder.7} parent=5 // pred_region
      %s91 = ssub.s32 %s7, 1
      %p92 = scmp.lt.s32.totalorder %s12, 1
      %s93 = scalar_select %p92, %s12, 1
      %s94 = smul.addr %s93, 4
      %s95 = scalar_lea.vmem %s0, %s94
      %p96 = pneg %p33
      %p97 = pneg %p30
      %p98 = pneg %p59
      %p99 = pneg %p56
      %p100 = scmp.lt.s32.totalorder %s12, 1
      %s101 = scalar_select %p100, %s12, 1
      %s102 = smul.addr %s101, 4
      %s103 = scalar_lea.vmem %s1, %s102
      %p104 = scmp.lt.s32.totalorder %s12, 1
      %s105 = scalar_select %p104, %s12, 1
      %s106 = smul.addr %s105, 4
      %s107 = scalar_lea.vmem %s0, %s106
      %p108 = scmp.lt.s32.totalorder %s12, 1
      %s109 = scalar_select %p108, %s12, 1
      %s110 = smul.addr %s109, 4
      %s111 = scalar_lea.vmem %s1, %s110
      %v113 = vld [vmem:[%s107] sm:$0xf]
      %v115 = vunpack.c.l.b16 %v113
      %v116 = vpack.c.b16 %v115, %v115
      %117 = vrot.lane.b32.xlu0 %v116, 96
      %v118 = vpop.permute.xlu0 %117
      %vm119 = vcmask 64512
      %v121 = vsel %vm119, %v113, 0
      %v124 = vsel %vm119, %v118, 0
      %126 = vmatpush.bf16.xpose.msra.mxu0 0
      %127 = vmatpush.bf16.xpose.msra.mxu0 0
      %128 = vmatpush.bf16.xpose.msra.mxu0 0
      %129 = vmatpush.bf16.xpose.msra.mxu0 0
      %130 = vmatpush.bf16.xpose.msra.mxu0 0
      %131 = vmatpush.bf16.xpose.msra.mxu0 0
      %132 = vmatpush.bf16.xpose.msra.mxu0 0
      %133 = vmatpush.bf16.xpose.msra.mxu0 %v124
      %134 = vmatmul.bf16.gmra.mxu0 %v121
      %v135 = vpop.f32.mrf.mxu0
      %v136 = vadd.f32 0.0, %v135
      %v137 = vpop.f32.mrf.mxu0
      %138 = vdwg.mxu0
      %v139 = vmul.f32 %v136, 2.828427
      %v140 = vsel %vm119, %v139, -inf
      %141 = vmax.xlane.f32.xlu0 %v140
      %v142 = vpop.xlane.xlu0 %141
      %v143 = vsub.f32 %v139, %v142
      %v144 = vmul.f32 %v143, 1.442695
      %v145 = vpow.pop %v144
      %v146 = vsel %vm119, %v145, 0.0
      %147 = vadd.xlane.f32.xlu0 %v146
      %v148 = vpop.xlane.xlu0 %147
      %v149 = vrcp.pop %v148
      %v150 = vmul.f32 %v145, %v149
      %v151 = vpack.c.bf16 %v150, %v150
      %152 = vrot.lane.b32.xlu0 %v116, 64
      %v153 = vpop.permute.xlu0 %152
      %v155 = vsel %vm119, %v151, 0
      %vm157 = vcmask 1043456
      %v159 = vsel %vm157, %v153, 0
      %161 = vmatpush.bf16.msra.mxu0 0
      %162 = vmatpush.bf16.msra.mxu0 0
      %163 = vmatpush.bf16.msra.mxu0 0
      %164 = vmatpush.bf16.msra.mxu0 0
      %165 = vmatpush.bf16.msra.mxu0 0
      %166 = vmatpush.bf16.msra.mxu0 0
      %167 = vmatpush.bf16.msra.mxu0 0
      %168 = vmatpush.bf16.msra.mxu0 %v159
      %169 = vmatmul.bf16.gmra.mxu0 %v155
      %v170 = vpop.f32.mrf.mxu0
      %v171 = vadd.f32 0.0, %v170
      %v172 = vpop.f32.mrf.mxu0
      %173 = vdwg.mxu0
      %v174 = vpack.c.bf16 %v171, %v171
      %vm175 = vcmask 60416
      %176 = vst.msk [vmem:[%s111] sm:$0xf] %vm175, %v174
      %v177 = vld [vmem:[%s107] sm:$0xf]
      %v179 = vunpack.c.l.b16 %v177
      %v180 = vpack.c.b16 %v179, %v179
      %181 = vrot.lane.b32.xlu0 %v180, 120
      %v182 = vpop.permute.xlu0 %181
      %183 = vrot.lane.b32.xlu0 %v180, 88
      %v184 = vpop.permute.xlu0 %183
      %v186 = vsel %vm119, %v182, 0
      %v189 = vsel %vm119, %v184, 0
      %191 = vmatpush.bf16.xpose.msra.mxu0 0
      %192 = vmatpush.bf16.xpose.msra.mxu0 0
      %193 = vmatpush.bf16.xpose.msra.mxu0 0
      %194 = vmatpush.bf16.xpose.msra.mxu0 0
      %195 = vmatpush.bf16.xpose.msra.mxu0 0
      %196 = vmatpush.bf16.xpose.msra.mxu0 0
      %197 = vmatpush.bf16.xpose.msra.mxu0 0
      %198 = vmatpush.bf16.xpose.msra.mxu0 %v189
      %199 = vmatmul.bf16.gmra.mxu0 %v186
      %v200 = vpop.f32.mrf.mxu0
      %v201 = vadd.f32 0.0, %v200
      %v202 = vpop.f32.mrf.mxu0
      %203 = vdwg.mxu0
      %v204 = vmul.f32 %v201, 2.828427
      %v205 = vsel %vm119, %v204, -inf
      %206 = vmax.xlane.f32.xlu0 %v205
      %v207 = vpop.xlane.xlu0 %206
      %v208 = vsub.f32 %v204, %v207
      %v209 = vmul.f32 %v208, 1.442695
      %v210 = vpow.pop %v209
      %v211 = vsel %vm119, %v210, 0.0
      %212 = vadd.xlane.f32.xlu0 %v211
      %v213 = vpop.xlane.xlu0 %212
      %v214 = vrcp.pop %v213
      %v215 = vmul.f32 %v210, %v214
      %v216 = vpack.c.bf16 %v215, %v215
      %217 = vrot.lane.b32.xlu0 %v180, 56
      %v218 = vpop.permute.xlu0 %217
      %v220 = vsel %vm119, %v216, 0
      %v223 = vsel %vm157, %v218, 0
      %225 = vmatpush.bf16.msra.mxu0 0
      %226 = vmatpush.bf16.msra.mxu0 0
      %227 = vmatpush.bf16.msra.mxu0 0
      %228 = vmatpush.bf16.msra.mxu0 0
      %229 = vmatpush.bf16.msra.mxu0 0
      %230 = vmatpush.bf16.msra.mxu0 0
      %231 = vmatpush.bf16.msra.mxu0 0
      %232 = vmatpush.bf16.msra.mxu0 %v223
      %233 = vmatmul.bf16.gmra.mxu0 %v220
      %v234 = vpop.f32.mrf.mxu0
      %v235 = vadd.f32 0.0, %v234
      %v236 = vpop.f32.mrf.mxu0
      %237 = vdwg.mxu0
      %v238 = vpack.c.bf16 %v235, %v235
      %240 = vrot.lane.b32.xlu0 %v238, 8
      %v241 = vpop.permute.xlu0 %240
      %vm243 = vcmask 126016
      %244 = vst.msk [vmem:[%s111] sm:$0xf] %vm243, %v241
      %v245 = vld [vmem:[%s107] sm:$0xf]
      %v247 = vunpack.c.l.b16 %v245
      %v248 = vpack.c.b16 %v247, %v247
      %249 = vrot.lane.b32.xlu0 %v248, 112
      %v250 = vpop.permute.xlu0 %249
      %251 = vrot.lane.b32.xlu0 %v248, 80
      %v252 = vpop.permute.xlu0 %251
      %v254 = vsel %vm119, %v250, 0
      %v257 = vsel %vm119, %v252, 0
      %259 = vmatpush.bf16.xpose.msra.mxu0 0
      %260 = vmatpush.bf16.xpose.msra.mxu0 0
      %261 = vmatpush.bf16.xpose.msra.mxu0 0
      %262 = vmatpush.bf16.xpose.msra.mxu0 0
      %263 = vmatpush.bf16.xpose.msra.mxu0 0
      %264 = vmatpush.bf16.xpose.msra.mxu0 0
      %265 = vmatpush.bf16.xpose.msra.mxu0 0
      %266 = vmatpush.bf16.xpose.msra.mxu0 %v257
      %267 = vmatmul.bf16.gmra.mxu0 %v254
      %v268 = vpop.f32.mrf.mxu0
      %v269 = vadd.f32 0.0, %v268
      %v270 = vpop.f32.mrf.mxu0
      %271 = vdwg.mxu0
      %v272 = vmul.f32 %v269, 2.828427
      %v273 = vsel %vm119, %v272, -inf
      %274 = vmax.xlane.f32.xlu0 %v273
      %v275 = vpop.xlane.xlu0 %274
      %v276 = vsub.f32 %v272, %v275
      %v277 = vmul.f32 %v276, 1.442695
      %v278 = vpow.pop %v277
      %v279 = vsel %vm119, %v278, 0.0
      %280 = vadd.xlane.f32.xlu0 %v279
      %v281 = vpop.xlane.xlu0 %280
      %v282 = vrcp.pop %v281
      %v283 = vmul.f32 %v278, %v282
      %v284 = vpack.c.bf16 %v283, %v283
      %285 = vrot.lane.b32.xlu0 %v248, 48
      %v286 = vpop.permute.xlu0 %285
      %v288 = vsel %vm119, %v284, 0
      %v291 = vsel %vm157, %v286, 0
      %293 = vmatpush.bf16.msra.mxu0 0
      %294 = vmatpush.bf16.msra.mxu0 0
      %295 = vmatpush.bf16.msra.mxu0 0
      %296 = vmatpush.bf16.msra.mxu0 0
      %297 = vmatpush.bf16.msra.mxu0 0
      %298 = vmatpush.bf16.msra.mxu0 0
      %299 = vmatpush.bf16.msra.mxu0 0
      %300 = vmatpush.bf16.msra.mxu0 %v291
      %301 = vmatmul.bf16.gmra.mxu0 %v288
      %v302 = vpop.f32.mrf.mxu0
      %v303 = vadd.f32 0.0, %v302
      %v304 = vpop.f32.mrf.mxu0
      %305 = vdwg.mxu0
      %v306 = vpack.c.bf16 %v303, %v303
      %308 = vrot.lane.b32.xlu0 %v306, 16
      %v309 = vpop.permute.xlu0 %308
      %vm311 = vcmask 191616
      %312 = vst.msk [vmem:[%s111] sm:$0xf] %vm311, %v309
      %v313 = vld [vmem:[%s107] sm:$0xf]
      %v315 = vunpack.c.l.b16 %v313
      %v316 = vpack.c.b16 %v315, %v315
      %317 = vrot.lane.b32.xlu0 %v316, 104
      %v318 = vpop.permute.xlu0 %317
      %319 = vrot.lane.b32.xlu0 %v316, 72
      %v320 = vpop.permute.xlu0 %319
      %v322 = vsel %vm119, %v318, 0
      %v325 = vsel %vm119, %v320, 0
      %327 = vmatpush.bf16.xpose.msra.mxu0 0
      %328 = vmatpush.bf16.xpose.msra.mxu0 0
      %329 = vmatpush.bf16.xpose.msra.mxu0 0
      %330 = vmatpush.bf16.xpose.msra.mxu0 0
      %331 = vmatpush.bf16.xpose.msra.mxu0 0
      %332 = vmatpush.bf16.xpose.msra.mxu0 0
      %333 = vmatpush.bf16.xpose.msra.mxu0 0
      %334 = vmatpush.bf16.xpose.msra.mxu0 %v325
      %335 = vmatmul.bf16.gmra.mxu0 %v322
      %v336 = vpop.f32.mrf.mxu0
      %v337 = vadd.f32 0.0, %v336
      %v338 = vpop.f32.mrf.mxu0
      %339 = vdwg.mxu0
      %v340 = vmul.f32 %v337, 2.828427
      %v341 = vsel %vm119, %v340, -inf
      %342 = vmax.xlane.f32.xlu0 %v341
      %v343 = vpop.xlane.xlu0 %342
      %v344 = vsub.f32 %v340, %v343
      %v345 = vmul.f32 %v344, 1.442695
      %v346 = vpow.pop %v345
      %v347 = vsel %vm119, %v346, 0.0
      %348 = vadd.xlane.f32.xlu0 %v347
      %v349 = vpop.xlane.xlu0 %348
      %v350 = vrcp.pop %v349
      %v351 = vmul.f32 %v346, %v350
      %v352 = vpack.c.bf16 %v351, %v351
      %353 = vrot.lane.b32.xlu0 %v316, 40
      %v354 = vpop.permute.xlu0 %353
      %v356 = vsel %vm119, %v352, 0
      %v359 = vsel %vm157, %v354, 0
      %361 = vmatpush.bf16.msra.mxu0 0
      %362 = vmatpush.bf16.msra.mxu0 0
      %363 = vmatpush.bf16.msra.mxu0 0
      %364 = vmatpush.bf16.msra.mxu0 0
      %365 = vmatpush.bf16.msra.mxu0 0
      %366 = vmatpush.bf16.msra.mxu0 0
      %367 = vmatpush.bf16.msra.mxu0 0
      %368 = vmatpush.bf16.msra.mxu0 %v359
      %369 = vmatmul.bf16.gmra.mxu0 %v356
      %v370 = vpop.f32.mrf.mxu0
      %v371 = vadd.f32 0.0, %v370
      %v372 = vpop.f32.mrf.mxu0
      %373 = vdwg.mxu0
      %v374 = vpack.c.bf16 %v371, %v371
      %376 = vrot.lane.b32.xlu0 %v374, 24
      %v377 = vpop.permute.xlu0 %376
      %vm379 = vcmask 257216
      %380 = vst.msk [vmem:[%s111] sm:$0xf] %vm379, %v377
      %p381 = scmp.lt.s32.totalorder %s12, 1
      %s382 = scalar_select %p381, %s12, 1
      %s383 = smul.addr %s382, 4
      %s384 = scalar_lea.vmem %s1, %s383
      // Predicated region
      $region25: #{transformer_encoder.7} parent=23 // pred_check
        %p385 = pneg %p56
      $region26: #{transformer_encoder.7} parent=23 // pred_check_branch
        %387 = sbr.rel (%p385) target = $region28
      $region27: #{transformer_encoder.7} parent=23 // pred_region
        _
      $region28: #{transformer_encoder.7} parent=23 // pred_fallthru
        _
    $region24: #{transformer_encoder.7} parent=5 // pred_fallthru
      _
    %p388 = scmp.le.s32.totalorder 2, %s7
    // Predicated region
    $region29: #{transformer_encoder.7} parent=5 // pred_check
      %p389 = pneg %p388
    $region30: #{transformer_encoder.7} parent=5 // pred_check_branch
      %391 = sbr.rel (%p389) target = $region32
    $region31: #{transformer_encoder.7} parent=5 // pred_region
      %s392 = ssub.s32 %s7, 2
      // Predicated region
      $region33: #{transformer_encoder.7} parent=31 // pred_check
        %p393 = pneg %p62
      $region34: #{transformer_encoder.7} parent=31 // pred_check_branch
        %395 = sbr.rel (%p393) target = $region36
      $region35: #{transformer_encoder.7} parent=31 // pred_region
        %p396 = scmp.lt.s32.totalorder %s13, 1
        %s397 = scalar_select %p396, %s13, 1
        %s398 = smul.addr %s397, 4
        %s399 = scalar_lea.vmem %s1, %s398
      $region36: #{transformer_encoder.7} parent=31 // pred_fallthru
        _
    $region32: #{transformer_encoder.7} parent=5 // pred_fallthru
      _
  $region6: #{transformer_encoder.7} parent=0 // loop_footer
    %s11 = sadd.s32 1, %s7
  $region7: #{transformer_encoder.7} parent=0 // loop_footer_branch
    %6 = sbr.rel target = $region3
  $region8: #{transformer_encoder.7} parent=0 // loop_exit
    _

// kernel: transformer_encoder.11
$region0: #{transformer_encoder.11}
  #allocation0 [shape = 'u32[]', space=smem, size = 0x4, offset = 0x4, fixed_abs, tag = 'smem constant byte address 0x4 - core index']
  #allocation1 [shape = 'u32[72,128]{1,0:T(1,128)}', space=vmem, size = 0x9000, scoped, tag = 'internal scratch']
  %s0 = inlined_call_operand.vmem [shape: f32[16,32], index: 0, kind: input, shape index: {}]
  %s1 = inlined_call_operand.vmem [shape: bf16[16,32], index: 1, kind: input, shape index: {}]
  %s2 = inlined_call_operand.vmem [shape: bf16[32,32], index: 2, kind: input, shape index: {}]
  %s3 = inlined_call_operand.vmem [shape: f32[1,32], index: 3, kind: input, shape index: {}]
  %s4 = inlined_call_operand.vmem [shape: f32[1,32], index: 4, kind: input, shape index: {}]
  %s5 = inlined_call_operand.vmem [shape: bf16[32,64], index: 5, kind: input, shape index: {}]
  %s6 = inlined_call_operand.vmem [shape: f32[1,64], index: 6, kind: input, shape index: {}]
  %s7 = inlined_call_operand.vmem [shape: bf16[64,32], index: 7, kind: input, shape index: {}]
  %s8 = inlined_call_operand.vmem [shape: f32[1,32], index: 8, kind: input, shape index: {}]
  %s9 = inlined_call_operand.vmem [shape: f32[1,32], index: 9, kind: input, shape index: {}]
  %s10 = inlined_call_operand.vmem [shape: f32[1,32], index: 10, kind: input, shape index: {}]
  %s11 = inlined_call_operand.hbm [shape: f32[16,32], index: 11, kind: output, shape index: {}]
  %s12 = sld [smem:[#allocation0]]
  $region54: #{transformer_encoder.11} parent=0
    _
  %s14 = ssub.s32 1, %s12
  %s15 = scalar_select 0, %s14, %s12
  $region1: #{transformer_encoder.11} parent=0
    #allocation2 [shape = 'u8[8192]{0}', space=vmem, size = 0x2000, scoped, tag = 'output window, operand 0, single buffered']
    #allocation3 [shape = 's32[1]{0}', space=sflag, size = 0x4, scoped, tag = 'scoped memory for transformer_encoder.11']
    %16 = vsyncpa [#allocation3], 0
    // Predicated region
    $region2: #{transformer_encoder.11} parent=1 // pred_check
      _
    $region3: #{transformer_encoder.11} parent=1 // pred_check_branch
      %18 = sbr.rel (0) target = $region5
    $region4: #{transformer_encoder.11} parent=1 // pred_region
      _
    $region5: #{transformer_encoder.11} parent=1 // pred_fallthru
      _
    // Predicated region
    $region6: #{transformer_encoder.11} parent=1 // pred_check
      _
    $region7: #{transformer_encoder.11} parent=1 // pred_check_branch
      %20 = sbr.rel (0) target = $region9
    $region8: #{transformer_encoder.11} parent=1 // pred_region
      _
    $region9: #{transformer_encoder.11} parent=1 // pred_fallthru
      _
    // Predicated region
    $region10: #{transformer_encoder.11} parent=1 // pred_check
      _
    $region11: #{transformer_encoder.11} parent=1 // pred_check_branch
      %22 = sbr.rel (0) target = $region13
    $region12: #{transformer_encoder.11} parent=1 // pred_region
      _
    $region13: #{transformer_encoder.11} parent=1 // pred_fallthru
      _
    // Predicated region
    $region14: #{transformer_encoder.11} parent=1 // pred_check
      _
    $region15: #{transformer_encoder.11} parent=1 // pred_check_branch
      %24 = sbr.rel (0) target = $region17
    $region16: #{transformer_encoder.11} parent=1 // pred_region
      _
    $region17: #{transformer_encoder.11} parent=1 // pred_fallthru
      _
    // Predicated region
    $region18: #{transformer_encoder.11} parent=1 // pred_check
      _
    $region19: #{transformer_encoder.11} parent=1 // pred_check_branch
      %26 = sbr.rel (0) target = $region21
    $region20: #{transformer_encoder.11} parent=1 // pred_region
      _
    $region21: #{transformer_encoder.11} parent=1 // pred_fallthru
      _
    // Predicated region
    $region22: #{transformer_encoder.11} parent=1 // pred_check
      _
    $region23: #{transformer_encoder.11} parent=1 // pred_check_branch
      %28 = sbr.rel (0) target = $region25
    $region24: #{transformer_encoder.11} parent=1 // pred_region
      _
    $region25: #{transformer_encoder.11} parent=1 // pred_fallthru
      _
    // Predicated region
    $region26: #{transformer_encoder.11} parent=1 // pred_check
      _
    $region27: #{transformer_encoder.11} parent=1 // pred_check_branch
      %30 = sbr.rel (0) target = $region29
    $region28: #{transformer_encoder.11} parent=1 // pred_region
      _
    $region29: #{transformer_encoder.11} parent=1 // pred_fallthru
      _
    // Predicated region
    $region30: #{transformer_encoder.11} parent=1 // pred_check
      _
    $region31: #{transformer_encoder.11} parent=1 // pred_check_branch
      %32 = sbr.rel (0) target = $region33
    $region32: #{transformer_encoder.11} parent=1 // pred_region
      _
    $region33: #{transformer_encoder.11} parent=1 // pred_fallthru
      _
    // Predicated region
    $region34: #{transformer_encoder.11} parent=1 // pred_check
      _
    $region35: #{transformer_encoder.11} parent=1 // pred_check_branch
      %34 = sbr.rel (0) target = $region37
    $region36: #{transformer_encoder.11} parent=1 // pred_region
      _
    $region37: #{transformer_encoder.11} parent=1 // pred_fallthru
      _
    // Predicated region
    $region38: #{transformer_encoder.11} parent=1 // pred_check
      _
    $region39: #{transformer_encoder.11} parent=1 // pred_check_branch
      %36 = sbr.rel (0) target = $region41
    $region40: #{transformer_encoder.11} parent=1 // pred_region
      _
    $region41: #{transformer_encoder.11} parent=1 // pred_fallthru
      _
    // Predicated region
    $region42: #{transformer_encoder.11} parent=1 // pred_check
      _
    $region43: #{transformer_encoder.11} parent=1 // pred_check_branch
      %38 = sbr.rel (0) target = $region45
    $region44: #{transformer_encoder.11} parent=1 // pred_region
      _
    $region45: #{transformer_encoder.11} parent=1 // pred_fallthru
      _
    %v40 = vld [vmem:[%s0] sm:$0xff]
    %v41 = vld [vmem:[%s0 + $0x8] sm:$0xff]
    %v42 = vld [vmem:[%s1] sm:$0xf]
    %v43 = vld [vmem:[%s1 + $0x4] sm:$0xf]
    %v44 = vld [vmem:[%s2] sm:$0xf]
    %v45 = vld [vmem:[%s2 + $0x4] sm:$0xf]
    %v46 = vld [vmem:[%s2 + $0x8] sm:$0xf]
    %v47 = vld [vmem:[%s2 + $0xc] sm:$0xf]
    %v50 = vunpack.c.l.b16 %v42
    %v51 = vunpack.c.l.b16 %v43
    %v52 = vpack.c.b16 %v51, %v50
    %v57 = vunpack.c.l.b16 %v44
    %v58 = vunpack.c.l.b16 %v45
    %v59 = vunpack.c.l.b16 %v46
    %v60 = vunpack.c.l.b16 %v47
    %v61 = vpack.c.b16 %v58, %v57
    %v62 = vpack.c.b16 %v60, %v59
    %vm65 = vcmask 261120
    %v67 = vsel %vm65, %v52, 0
    %69 = vmatpush.bf16.msra.mxu0 0
    %70 = vmatpush.bf16.msra.mxu0 0
    %71 = vmatpush.bf16.msra.mxu0 0
    %72 = vmatpush.bf16.msra.mxu0 0
    %73 = vmatpush.bf16.msra.mxu0 0
    %74 = vmatpush.bf16.msra.mxu0 0
    %75 = vmatpush.bf16.msra.mxu0 %v62
    %76 = vmatpush.bf16.msra.mxu0 %v61
    %77 = vmatmul.bf16.gmra.mxu0 %v67
    %v78 = vpop.f32.mrf.mxu0
    %v79 = vadd.f32 0.0, %v78
    %v80 = vpop.f32.mrf.mxu0
    %v81 = vadd.f32 0.0, %v80
    %82 = vdwg.mxu0
    %v83 = vadd.f32 %v40, %v79
    %v84 = vadd.f32 %v41, %v81
    %v85 = vsel %vm65, %v83, 0.0
    %86 = vadd.xlane.f32.xlu0 %v85
    %v87 = vpop.xlane.xlu0 %86
    %v88 = vsel %vm65, %v84, 0.0
    %89 = vadd.xlane.f32.xlu0 %v88
    %v90 = vpop.xlane.xlu0 %89
    %v91 = vrcp.pop 32.0
    %v92 = vmul.f32 32.0, %v91
    %v93 = vsub.f32 1.0, %v92
    %v94 = vmul.f32 %v91, %v93
    %v95 = vadd.f32 %v91, %v94
    %vm96 = vweird.f32 %v91
    %v97 = vsel %vm96, %v91, %v95
    %v98 = vmul.f32 %v87, %v97
    %v99 = vmul.f32 %v90, %v97
    %v100 = vsub.f32 %v83, %v98
    %v101 = vsub.f32 %v84, %v99
    %v102 = vmul.f32 %v100, %v100
    %v103 = vmul.f32 %v101, %v101
    %v104 = vsel %vm65, %v102, 0.0
    %105 = vadd.xlane.f32.xlu0 %v104
    %v106 = vpop.xlane.xlu0 %105
    %v107 = vsel %vm65, %v103, 0.0
    %108 = vadd.xlane.f32.xlu0 %v107
    %v109 = vpop.xlane.xlu0 %108
    %v110 = vmul.f32 %v106, %v97
    %v111 = vmul.f32 %v109, %v97
    %v112 = vadd.f32 %v110, 1e-05
    %v113 = vadd.f32 %v111, 1e-05
    %v114 = vrsqrt.pop %v112
    %v115 = vmul.f32 %v114, %v112
    %v116 = vmul.f32 %v115, %v114
    %v117 = vmul.f32 0.5, %v116
    %v118 = vsub.f32 1.5, %v117
    %v119 = vmul.f32 %v114, %v118
    %vm120 = vweird.f32 %v112
    %vm121 = vweird.f32 %v114
    %vm122 = vmor %vm120, %vm121
    %v123 = vsel %vm122, %v114, %v119
    %v124 = vrsqrt.pop %v113
    %v125 = vmul.f32 %v124, %v113
    %v126 = vmul.f32 %v125, %v124
    %v127 = vmul.f32 0.5, %v126
    %v128 = vsub.f32 1.5, %v127
    %v129 = vmul.f32 %v124, %v128
    %vm130 = vweird.f32 %v113
    %vm131 = vweird.f32 %v124
    %vm132 = vmor %vm130, %vm131
    %v133 = vsel %vm132, %v124, %v129
    %v134 = vmul.f32 %v100, %v123
    %v135 = vmul.f32 %v101, %v133
    %v136 = vld [vmem:[%s3] sm:$0x1]
    %v138 = vperm.slane %v136, 0
    %v140 = vmul.f32 %v134, %v138
    %v141 = vmul.f32 %v135, %v138
    %v142 = vld [vmem:[%s4] sm:$0x1]
    %v144 = vperm.slane %v142, 0
    %v146 = vadd.f32 %v140, %v144
    %v147 = vadd.f32 %v141, %v144
    %v148 = vpack.c.bf16 %v147, %v146
    %v149 = vld [vmem:[%s5] sm:$0xf]
    %v150 = vld [vmem:[%s5 + $0x4] sm:$0xf]
    %v151 = vld [vmem:[%s5 + $0x8] sm:$0xf]
    %v152 = vld [vmem:[%s5 + $0xc] sm:$0xf]
    %v153 = vld [vmem:[%s6] sm:$0x1]
    %v155 = vperm.slane %v153, 0
    %v161 = vunpack.c.l.b16 %v149
    %v162 = vunpack.c.l.b16 %v150
    %v163 = vunpack.c.l.b16 %v151
    %v164 = vunpack.c.l.b16 %v152
    %v165 = vpack.c.b16 %v162, %v161
    %v166 = vpack.c.b16 %v164, %v163
    %v170 = vsel %vm65, %v148, 0
    %172 = vmatpush.bf16.msra.mxu0 0
    %173 = vmatpush.bf16.msra.mxu0 0
    %174 = vmatpush.bf16.msra.mxu0 0
    %175 = vmatpush.bf16.msra.mxu0 0
    %176 = vmatpush.bf16.msra.mxu0 0
    %177 = vmatpush.bf16.msra.mxu0 0
    %178 = vmatpush.bf16.msra.mxu0 %v166
    %179 = vmatpush.bf16.msra.mxu0 %v165
    %180 = vmatmul.bf16.gmra.mxu0 %v170
    %v181 = vpop.f32.mrf.mxu0
    %v182 = vadd.f32 %v155, %v181
    %v183 = vpop.f32.mrf.mxu0
    %v184 = vadd.f32 %v155, %v183
    %185 = vdwg.mxu0
    %v186 = vmul.f32 %v182, 0.5
    %v187 = vmul.f32 %v184, 0.5
    %v188 = vmul.f32 %v182, 0.70710677
    %v189 = vmul.f32 %v184, 0.70710677
    %v190 = vmul.f32 %v188, %v188
    %v191 = vmin.f32 16.0, %v190
    %v192 = vmul.f32 %v191, 2.1237322e-06
    %v193 = vadd.f32 %v192, 0.00028619796
    %v194 = vmul.f32 %v191, %v193
    %v195 = vadd.f32 %v194, 0.0036580483
    %v196 = vmul.f32 %v191, %v195
    %v197 = vadd.f32 %v196, 0.05243302
    %v198 = vmul.f32 %v191, %v197
    %v199 = vadd.f32 %v198, 0.18741608
    %v200 = vmul.f32 %v191, %v199
    %v201 = vadd.f32 %v200, 1.1283791
    %v202 = vmul.f32 %v188, %v201
    %v203 = vmul.f32 %v191, 3.8918573e-05
    %v204 = vadd.f32 %v203, 0.001143296
    %v205 = vmul.f32 %v191, %v204
    %v206 = vadd.f32 %v205, 0.014752088
    %v207 = vmul.f32 %v191, %v206
    %v208 = vadd.f32 %v207, 0.112945676
    %v209 = vmul.f32 %v191, %v208
    %v210 = vadd.f32 %v209, 0.4994258
    %v211 = vmul.f32 %v191, %v210
    %v212 = vadd.f32 %v211, 1.0
    %v213 = vrcp.pop %v212
    %v214 = vmul.f32 %v212, %v213
    %v215 = vsub.f32 1.0, %v214
    %v216 = vmul.f32 %v213, %v215
    %v217 = vadd.f32 %v213, %v216
    %vm218 = vweird.f32 %v212
    %vm219 = vweird.f32 %v213
    %vm220 = vmor %vm218, %vm219
    %v221 = vsel %vm220, %v213, %v217
    %v222 = vand.u32 2147483647, %v212
    %vm223 = vcmp.eq.f32.partialorder %v222, 8.507059e+37
    %v224 = vand.u32 %v212, 2147483648
    %v225 = vor.u32 1.1754944e-38, %v224
    %v226 = vsel %vm223, %v225, %v221
    %v227 = vmul.f32 %v202, %v226
    %v228 = vmin.f32 %v227, 1.0
    %v229 = vmax.f32 %v228, -1.0
    %v230 = vmul.f32 %v189, %v189
    %v231 = vmin.f32 16.0, %v230
    %v232 = vmul.f32 %v231, 2.1237322e-06
    %v233 = vadd.f32 %v232, 0.00028619796
    %v234 = vmul.f32 %v231, %v233
    %v235 = vadd.f32 %v234, 0.0036580483
    %v236 = vmul.f32 %v231, %v235
    %v237 = vadd.f32 %v236, 0.05243302
    %v238 = vmul.f32 %v231, %v237
    %v239 = vadd.f32 %v238, 0.18741608
    %v240 = vmul.f32 %v231, %v239
    %v241 = vadd.f32 %v240, 1.1283791
    %v242 = vmul.f32 %v189, %v241
    %v243 = vmul.f32 %v231, 3.8918573e-05
    %v244 = vadd.f32 %v243, 0.001143296
    %v245 = vmul.f32 %v231, %v244
    %v246 = vadd.f32 %v245, 0.014752088
    %v247 = vmul.f32 %v231, %v246
    %v248 = vadd.f32 %v247, 0.112945676
    %v249 = vmul.f32 %v231, %v248
    %v250 = vadd.f32 %v249, 0.4994258
    %v251 = vmul.f32 %v231, %v250
    %v252 = vadd.f32 %v251, 1.0
    %v253 = vrcp.pop %v252
    %v254 = vmul.f32 %v252, %v253
    %v255 = vsub.f32 1.0, %v254
    %v256 = vmul.f32 %v253, %v255
    %v257 = vadd.f32 %v253, %v256
    %vm258 = vweird.f32 %v252
    %vm259 = vweird.f32 %v253
    %vm260 = vmor %vm258, %vm259
    %v261 = vsel %vm260, %v253, %v257
    %v262 = vand.u32 2147483647, %v252
    %vm263 = vcmp.eq.f32.partialorder %v262, 8.507059e+37
    %v264 = vand.u32 %v252, 2147483648
    %v265 = vor.u32 1.1754944e-38, %v264
    %v266 = vsel %vm263, %v265, %v261
    %v267 = vmul.f32 %v242, %v266
    %v268 = vmin.f32 %v267, 1.0
    %v269 = vmax.f32 %v268, -1.0
    %v270 = vadd.f32 %v229, 1.0
    %v271 = vadd.f32 %v269, 1.0
    %v272 = vmul.f32 %v186, %v270
    %v273 = vmul.f32 %v187, %v271
    %v274 = vpack.c.bf16 %v273, %v272
    %v275 = vld [vmem:[%s7] sm:$0xf]
    %v276 = vld [vmem:[%s7 + $0x4] sm:$0xf]
    %v277 = vld [vmem:[%s7 + $0x8] sm:$0xf]
    %v278 = vld [vmem:[%s7 + $0xc] sm:$0xf]
    %v279 = vld [vmem:[%s7 + $0x10] sm:$0xf]
    %v280 = vld [vmem:[%s7 + $0x14] sm:$0xf]
    %v281 = vld [vmem:[%s7 + $0x18] sm:$0xf]
    %v282 = vld [vmem:[%s7 + $0x1c] sm:$0xf]
    %v283 = vld [vmem:[%s8] sm:$0x1]
    %v285 = vperm.slane %v283, 0
    %v295 = vunpack.c.l.b16 %v275
    %v296 = vunpack.c.l.b16 %v276
    %v297 = vunpack.c.l.b16 %v277
    %v298 = vunpack.c.l.b16 %v278
    %v299 = vunpack.c.l.b16 %v279
    %v300 = vunpack.c.l.b16 %v280
    %v301 = vunpack.c.l.b16 %v281
    %v302 = vunpack.c.l.b16 %v282
    %v303 = vpack.c.b16 %v296, %v295
    %v304 = vpack.c.b16 %v298, %v297
    %v305 = vpack.c.b16 %v300, %v299
    %v306 = vpack.c.b16 %v302, %v301
    %vm311 = vcmask 523264
    %v313 = vsel %vm311, %v274, 0
    %315 = vmatpush.bf16.msra.mxu0 0
    %316 = vmatpush.bf16.msra.mxu0 0
    %317 = vmatpush.bf16.msra.mxu0 0
    %318 = vmatpush.bf16.msra.mxu0 0
    %319 = vmatpush.bf16.msra.mxu0 %v306
    %320 = vmatpush.bf16.msra.mxu0 %v305
    %321 = vmatpush.bf16.msra.mxu0 %v304
    %322 = vmatpush.bf16.msra.mxu0 %v303
    %323 = vmatmul.bf16.gmra.mxu0 %v313
    %v324 = vpop.f32.mrf.mxu0
    %v325 = vadd.f32 %v285, %v324
    %v326 = vpop.f32.mrf.mxu0
    %v327 = vadd.f32 %v285, %v326
    %328 = vdwg.mxu0
    %v329 = vadd.f32 %v146, %v325
    %v330 = vadd.f32 %v147, %v327
    %v331 = vsel %vm65, %v329, 0.0
    %332 = vadd.xlane.f32.xlu0 %v331
    %v333 = vpop.xlane.xlu0 %332
    %v334 = vsel %vm65, %v330, 0.0
    %335 = vadd.xlane.f32.xlu0 %v334
    %v336 = vpop.xlane.xlu0 %335
    %v337 = vmul.f32 %v333, %v97
    %v338 = vmul.f32 %v336, %v97
    %v339 = vsub.f32 %v329, %v337
    %v340 = vsub.f32 %v330, %v338
    %v341 = vmul.f32 %v339, %v339
    %v342 = vmul.f32 %v340, %v340
    %v343 = vsel %vm65, %v341, 0.0
    %344 = vadd.xlane.f32.xlu0 %v343
    %v345 = vpop.xlane.xlu0 %344
    %v346 = vsel %vm65, %v342, 0.0
    %347 = vadd.xlane.f32.xlu0 %v346
    %v348 = vpop.xlane.xlu0 %347
    %v349 = vmul.f32 %v345, %v97
    %v350 = vmul.f32 %v348, %v97
    %v351 = vadd.f32 %v349, 1e-05
    %v352 = vadd.f32 %v350, 1e-05
    %v353 = vrsqrt.pop %v351
    %v354 = vmul.f32 %v353, %v351
    %v355 = vmul.f32 %v354, %v353
    %v356 = vmul.f32 0.5, %v355
    %v357 = vsub.f32 1.5, %v356
    %v358 = vmul.f32 %v353, %v357
    %vm359 = vweird.f32 %v351
    %vm360 = vweird.f32 %v353
    %vm361 = vmor %vm359, %vm360
    %v362 = vsel %vm361, %v353, %v358
    %v363 = vrsqrt.pop %v352
    %v364 = vmul.f32 %v363, %v352
    %v365 = vmul.f32 %v364, %v363
    %v366 = vmul.f32 0.5, %v365
    %v367 = vsub.f32 1.5, %v366
    %v368 = vmul.f32 %v363, %v367
    %vm369 = vweird.f32 %v352
    %vm370 = vweird.f32 %v363
    %vm371 = vmor %vm369, %vm370
    %v372 = vsel %vm371, %v363, %v368
    %v373 = vmul.f32 %v339, %v362
    %v374 = vmul.f32 %v340, %v372
    %v375 = vld [vmem:[%s9] sm:$0x1]
    %v377 = vperm.slane %v375, 0
    %v379 = vmul.f32 %v373, %v377
    %v380 = vmul.f32 %v374, %v377
    %v381 = vld [vmem:[%s10] sm:$0x1]
    %v383 = vperm.slane %v381, 0
    %v385 = vadd.f32 %v379, %v383
    %v386 = vadd.f32 %v380, %v383
    %387 = vst.msk [vmem:[#allocation2] sm:$0xff] %vm65, %v385
    %388 = vst.msk [vmem:[#allocation2 + $0x8] sm:$0xff] %vm65, %v386
    // Predicated region
    $region46: #{transformer_encoder.11} parent=1 // pred_check
      _
    $region47: #{transformer_encoder.11} parent=1 // pred_check_branch
      %390 = sbr.rel (0) target = $region49
    $region48: #{transformer_encoder.11} parent=1 // pred_region
      %392 = vsyncadd [#allocation3], 0
      %s393 = sshll.u32 [#allocation2], 4
      %s394 = int_to_ptr.vmem [resolvable:$true] %s393
      %s395 = sshll.u32 %s11, 4
      %s396 = int_to_ptr.hbm [resolvable:$true] %s395
      %401 = dma.vmem_to_hbm [thread:$0]  %s394, 256, %s396, [#allocation3], 128, 128, 8
    $region49: #{transformer_encoder.11} parent=1 // pred_fallthru
      _
    // Predicated region
    $region50: #{transformer_encoder.11} parent=1 // pred_check
      _
    $region51: #{transformer_encoder.11} parent=1 // pred_check_branch
      %403 = sbr.rel (0) target = $region53
    $region52: #{transformer_encoder.11} parent=1 // pred_region
      %405 = dma.done [#allocation3], 256
    $region53: #{transformer_encoder.11} parent=1 // pred_fallthru
      _
    %406 = vsyncpa [#allocation3], 1

</llo_original>
